<compile_context>
chip_gen: v7x
topology: tpu7x:2x2x1
jax: 0.10.0
libtpu: 0.0.40
codegen_flags: <defaults>
</compile_context>

<pallas_src>
import functools
import math

import jax
import jax.numpy as jnp
from jax.experimental import pallas as pl
from jax.experimental.pallas import tpu as pltpu

_BN_EPS = 1e-5


# ----------------------------- helpers ---------------------------------------

def _round_up(v, m):
    return ((v + m - 1) // m) * m


def _vmem_capacity_bytes():
    """Physical VMEM per TensorCore; conservative 64 MiB (v7x) fallback."""
    try:
        cap = int(getattr(pltpu.get_tpu_info(), "vmem_capacity_bytes"))
        if cap > 0:
            return cap
    except Exception:
        pass
    return 64 << 20


def _vmem_limit(need_bytes, cap):
    """Scoped VMEM request: 2x the working set + headroom, never more than
    3/4 of physical capacity (leave room for Mosaic internal scratch)."""
    return int(min(max(2 * need_bytes + (2 << 20), 8 << 20), cap * 3 // 4))


def _bytes(shape, dtype):
    return math.prod(shape) * jnp.dtype(dtype).itemsize


def _pick_batch_tile(n):
    # Per-grid-step overhead ~0.35us and tiles are tiny at these widths, so
    # prefer large row tiles (>=512 reaches ~85% of HBM roofline).
    for t in (2048, 1024, 512, 256, 128, 64, 32, 16, 8):
        if n % t == 0:
            return t
    return n  # tiny / odd batch: a single full-batch tile


# ----------------------------- fused kernel ----------------------------------

def _fused_kernel(x_ref, w1_ref, w2_ref, w3_ref, g1_ref, be1_ref,
                  g2_ref, be2_ref, b3_ref, o_ref, h1_ref, h2_ref, *, inv_n):
    """Whole network in one call; h1/h2 stay in VMEM scratch, full-batch BN
    is an in-kernel reduction.  bf16 MXU operands, f32 accumulation/epilogue."""
    # ---- layer 1: h1 = x @ W1 -------------------------------------------------
    h1_ref[...] = jnp.dot(x_ref[...].astype(jnp.bfloat16), w1_ref[...],
                          preferred_element_type=jnp.float32)
    h1 = h1_ref[...]
    mu1 = jnp.sum(h1, axis=0, keepdims=True) * inv_n
    var1 = jnp.maximum(
        jnp.sum(h1 * h1, axis=0, keepdims=True) * inv_n - mu1 * mu1, 0.0)
    scale1 = g1_ref[...] * jax.lax.rsqrt(var1 + _BN_EPS)
    shift1 = be1_ref[...] - mu1 * scale1
    a1 = jnp.maximum(h1 * scale1 + shift1, 0.0)

    # ---- layer 2: h2 = a1 @ W2 ------------------------------------------------
    h2_ref[...] = jnp.dot(a1.astype(jnp.bfloat16), w2_ref[...],
                          preferred_element_type=jnp.float32)
    h2 = h2_ref[...]
    mu2 = jnp.sum(h2, axis=0, keepdims=True) * inv_n
    var2 = jnp.maximum(
        jnp.sum(h2 * h2, axis=0, keepdims=True) * inv_n - mu2 * mu2, 0.0)
    scale2 = g2_ref[...] * jax.lax.rsqrt(var2 + _BN_EPS)
    shift2 = be2_ref[...] - mu2 * scale2
    a2 = jnp.maximum(h2 * scale2 + shift2, 0.0)

    # ---- layer 3 + output ReLU (lane-dense padded output) ----------------------
    h3 = jnp.dot(a2.astype(jnp.bfloat16), w3_ref[...],
                 preferred_element_type=jnp.float32) + b3_ref[...]
    o_ref[...] = jnp.maximum(h3, 0.0).astype(o_ref.dtype)


def _fused_forward(x, params, pad_out, cap):
    N, D_in = x.shape
    H1 = params["w1"].shape[1]
    H2 = params["w2"].shape[1]
    D_out = params["w3"].shape[1]
    H1p = _round_up(H1, 128)
    H2p = _round_up(H2, 128)

    # Zero-pad weights and BN params so padded features are exactly zero
    # through BN+ReLU (gamma=0, beta=0 -> scale=0, shift=0).
    w1p = jnp.pad(params["w1"].astype(jnp.bfloat16), ((0, 0), (0, H1p - H1)))
    w2p = jnp.pad(params["w2"].astype(jnp.bfloat16),
                  ((0, H1p - H1), (0, H2p - H2)))
    w3p = jnp.pad(params["w3"].astype(jnp.bfloat16),
                  ((0, H2p - H2), (0, pad_out - D_out)))
    g1p = jnp.pad(params["g1"], ((0, 0), (0, H1p - H1)))
    be1p = jnp.pad(params["be1"], ((0, 0), (0, H1p - H1)))
    g2p = jnp.pad(params["g2"], ((0, 0), (0, H2p - H2)))
    be2p = jnp.pad(params["be2"], ((0, 0), (0, H2p - H2)))
    b3p = jnp.pad(params["b3"], ((0, 0), (0, pad_out - D_out)))
    # b1/b2 cancelled exactly by training-mode BN mean subtraction.

    need = (_bytes((N, D_in), jnp.float32) + _bytes((N, pad_out), jnp.float32)
            + _bytes((N, H1p), jnp.float32) + _bytes((N, H2p), jnp.float32)
            + _bytes((D_in, H1p), jnp.bfloat16) + _bytes((H1p, H2p), jnp.bfloat16)
            + _bytes((H2p, pad_out), jnp.bfloat16))

    def full(shape):
        return pl.BlockSpec(shape, lambda i: (0,) * len(shape))

    out_padded = pl.pallas_call(
        functools.partial(_fused_kernel, inv_n=1.0 / N),
        grid=(1,),
        in_specs=[full((N, D_in)), full((D_in, H1p)), full((H1p, H2p)),
                  full((H2p, pad_out)), full((1, H1p)), full((1, H1p)),
                  full((1, H2p)), full((1, H2p)), full((1, pad_out))],
        out_specs=full((N, pad_out)),
        out_shape=jax.ShapeDtypeStruct((N, pad_out), jnp.float32),
        scratch_shapes=[pltpu.VMEM((N, H1p), jnp.float32),
                        pltpu.VMEM((N, H2p), jnp.float32)],
        compiler_params=pltpu.CompilerParams(
            dimension_semantics=("arbitrary",),
            vmem_limit_bytes=_vmem_limit(need, cap)),
    )(x, w1p, w2p, w3p, g1p, be1p, g2p, be2p, b3p)
    return out_padded[:, :D_out]


# ----------------------------- 3-pass fallback --------------------------------

def _layer1_kernel(x_ref, w1_ref, h1_ref, stats_ref):
    """h1 = x @ W1 (in-kernel bf16 cast); store h1 in bf16; emit per-tile
    (sum, sumsq) partials as one full-block write."""
    h1 = jnp.dot(x_ref[...].astype(jnp.bfloat16), w1_ref[...],
                 preferred_element_type=jnp.float32)
    h1_ref[...] = h1.astype(h1_ref.dtype)
    s = jnp.sum(h1, axis=0, keepdims=True)
    sq = jnp.sum(h1 * h1, axis=0, keepdims=True)
    stats_ref[0] = jnp.concatenate([s, sq], axis=0)


def _layer2_kernel(h1_ref, sc1_ref, sh1_ref, w2_ref, h2_ref, stats_ref):
    """BN1 (pre-folded scale/shift) + ReLU, h2 = a1 @ W2, per-tile stats."""
    a1 = jnp.maximum(
        h1_ref[...].astype(jnp.float32) * sc1_ref[...] + sh1_ref[...], 0.0)
    h2 = jnp.dot(a1.astype(jnp.bfloat16), w2_ref[...],
                 preferred_element_type=jnp.float32)
    h2_ref[...] = h2.astype(h2_ref.dtype)
    s = jnp.sum(h2, axis=0, keepdims=True)
    sq = jnp.sum(h2 * h2, axis=0, keepdims=True)
    stats_ref[0] = jnp.concatenate([s, sq], axis=0)


def _layer3_kernel(h2_ref, sc2_ref, sh2_ref, w3_ref, b3_ref, o_ref):
    """BN2 + ReLU, out = ReLU(a2 @ W3 + b3) into a lane-dense output."""
    a2 = jnp.maximum(
        h2_ref[...].astype(jnp.float32) * sc2_ref[...] + sh2_ref[...], 0.0)
    h3 = jnp.dot(a2.astype(jnp.bfloat16), w3_ref[...],
                 preferred_element_type=jnp.float32) + b3_ref[...]
    o_ref[...] = jnp.maximum(h3, 0.0).astype(o_ref.dtype)


def _fold_bn(stats_partial, gamma, beta, inv_n):
    """Tiny (1,H) JAX op between passes: fold BN into per-feature scale/shift."""
    stats = jnp.sum(stats_partial, axis=0)                  # (2, H)
    mu = stats[0:1, :] * inv_n
    var = jnp.maximum(stats[1:2, :] * inv_n - mu * mu, 0.0)  # clamp f32 cancel.
    scale = gamma * jax.lax.rsqrt(var + _BN_EPS)
    shift = beta - mu * scale
    return scale, shift


def _three_pass_forward(x, params, pad_out, cap, batch_tile=None):
    N, D_in = x.shape
    H1 = params["w1"].shape[1]
    H2 = params["w2"].shape[1]
    D_out = params["w3"].shape[1]

    tm = batch_tile or _pick_batch_tile(N)
    assert N % tm == 0, "batch must tile evenly; pass batch_tile dividing N"
    nb = N // tm
    inv_n = 1.0 / N

    w1 = params["w1"].astype(jnp.bfloat16)
    w2 = params["w2"].astype(jnp.bfloat16)
    w3 = jnp.pad(params["w3"].astype(jnp.bfloat16),
                 ((0, 0), (0, pad_out - D_out)))
    b3 = jnp.pad(params["b3"], ((0, 0), (0, pad_out - D_out)))
    g1, be1, g2, be2 = params["g1"], params["be1"], params["g2"], params["be2"]

    def cp(tensors):
        need = sum(_bytes(s, d) for s, d in tensors)
        return pltpu.CompilerParams(dimension_semantics=("parallel",),
                                    vmem_limit_bytes=_vmem_limit(need, cap))

    def tiled(cols):
        return pl.BlockSpec((tm, cols), lambda i: (i, 0))

    def resident(*shape):
        return pl.BlockSpec(shape, lambda i: (0,) * len(shape))

    def stats_spec(h):
        return pl.BlockSpec((1, 2, h), lambda i: (i, 0, 0))

    # ---- pass 1: h1 = x @ W1 (bf16 out), per-tile BN1 partial stats ----------
    h1, p1 = pl.pallas_call(
        _layer1_kernel,
        grid=(nb,),
        in_specs=[tiled(D_in), resident(D_in, H1)],
        out_specs=(tiled(H1), stats_spec(H1)),
        out_shape=(jax.ShapeDtypeStruct((N, H1), jnp.bfloat16),
                   jax.ShapeDtypeStruct((nb, 2, H1), jnp.float32)),
        compiler_params=cp([((tm, D_in), jnp.float32), ((tm, H1), jnp.bfloat16),
                            ((D_in, H1), jnp.bfloat16), ((1, 2, H1), jnp.float32)]),
    )(x, w1)
    sc1, sh1 = _fold_bn(p1, g1, be1, inv_n)

    # ---- pass 2: BN1+ReLU, h2 = a1 @ W2 (bf16 out), BN2 partial stats ---------
    h2, p2 = pl.pallas_call(
        _layer2_kernel,
        grid=(nb,),
        in_specs=[tiled(H1), resident(1, H1), resident(1, H1), resident(H1, H2)],
        out_specs=(tiled(H2), stats_spec(H2)),
        out_shape=(jax.ShapeDtypeStruct((N, H2), jnp.bfloat16),
                   jax.ShapeDtypeStruct((nb, 2, H2), jnp.float32)),
        compiler_params=cp([((tm, H1), jnp.bfloat16), ((tm, H2), jnp.bfloat16),
                            ((H1, H2), jnp.bfloat16), ((1, H1), jnp.float32),
                            ((1, H1), jnp.float32), ((1, 2, H2), jnp.float32)]),
    )(h1, sc1, sh1, w2)
    sc2, sh2 = _fold_bn(p2, g2, be2, inv_n)

    # ---- pass 3: BN2+ReLU, out = ReLU(a2 @ W3 + b3), lane-dense output --------
    out_padded = pl.pallas_call(
        _layer3_kernel,
        grid=(nb,),
        in_specs=[tiled(H2), resident(1, H2), resident(1, H2),
                  resident(H2, pad_out), resident(1, pad_out)],
        out_specs=tiled(pad_out),
        out_shape=jax.ShapeDtypeStruct((N, pad_out), jnp.float32),
        compiler_params=cp([((tm, H2), jnp.bfloat16), ((tm, pad_out), jnp.float32),
                            ((H2, pad_out), jnp.bfloat16),
                            ((1, H2), jnp.float32), ((1, pad_out), jnp.float32)]),
    )(h2, sc2, sh2, w3, b3)
    return out_padded[:, :D_out]


# ----------------------------- dispatcher -------------------------------------

def domain_classifier_forward(x, params, *, mode="auto", batch_tile=None):
    """Forward pass of Domain_Classifier (training-mode BatchNorm).

    x: (N, D_in) float array. params: dict from init_params.
    mode: "auto" (fused when it fits VMEM, else 3-pass), "fused", "three_pass".
    Returns (N, D_out) float32.
    """
    N, D_in = x.shape
    H1 = params["w1"].shape[1]
    H2 = params["w2"].shape[1]
    D_out = params["w3"].shape[1]
    pad_out = _round_up(D_out, 128)
    cap = _vmem_capacity_bytes()

    if mode == "auto":
        H1p, H2p = _round_up(H1, 128), _round_up(H2, 128)
        fused_need = (N * (D_in + H1p + H2p + pad_out) * 4
                      + 2 * (D_in * H1p + H1p * H2p + H2p * pad_out))
        # Hardware-derived threshold: ~40% of per-core VMEM (half as large on
        # v7x's 64 MiB as on v5e/v6e's 128 MiB).
        mode = "fused" if fused_need <= cap * 2 // 5 else "three_pass"

    if mode == "fused":
        return _fused_forward(x, params, pad_out, cap)
    return _three_pass_forward(x, params, pad_out, cap, batch_tile=batch_tile)


# ----------------------------- init & references ------------------------------

def init_params(key, D_in, H1, H2, D_out):
    """Deterministic synthetic init mirroring PyTorch defaults. Linear weights
    stored pre-transposed as (in, out); biases / BN params as (1, F)."""
    ks = jax.random.split(key, 6)

    def lin(kw, kb, fan_in, fan_out):
        bound = 1.0 / math.sqrt(fan_in)
        w = jax.random.uniform(kw, (fan_in, fan_out), jnp.float32, -bound, bound)
        b = jax.random.uniform(kb, (1, fan_out), jnp.float32, -bound, bound)
        return w, b

    w1, b1 = lin(ks[0], ks[1], D_in, H1)
    w2, b2 = lin(ks[2], ks[3], H1, H2)
    w3, b3 = lin(ks[4], ks[5], H2, D_out)
    return {
        "w1": w1, "b1": b1,
        "g1": jnp.ones((1, H1), jnp.float32), "be1": jnp.zeros((1, H1), jnp.float32),
        "w2": w2, "b2": b2,
        "g2": jnp.ones((1, H2), jnp.float32), "be2": jnp.zeros((1, H2), jnp.float32),
        "w3": w3, "b3": b3,
    }


def reference_forward_f32(x, p):
    """Exact PyTorch training-mode semantics, full f32 (includes b1/b2)."""
    def bn(h, g, b):
        mu = jnp.mean(h, axis=0, keepdims=True)
        var = jnp.mean((h - mu) ** 2, axis=0, keepdims=True)
        return (h - mu) * jax.lax.rsqrt(var + _BN_EPS) * g + b

    h = jnp.maximum(bn(x @ p["w1"] + p["b1"], p["g1"], p["be1"]), 0.0)
    h = jnp.maximum(bn(h @ p["w2"] + p["b2"], p["g2"], p["be2"]), 0.0)
    return jnp.maximum(h @ p["w3"] + p["b3"], 0.0)


def _dot_bf16(a, w):
    return jnp.dot(a.astype(jnp.bfloat16), w.astype(jnp.bfloat16),
                   preferred_element_type=jnp.float32)


def _bn_fold_ref(h, g, b, n):
    mu = jnp.sum(h, axis=0, keepdims=True) / n
    var = jnp.maximum(jnp.sum(h * h, axis=0, keepdims=True) / n - mu * mu, 0.0)
    scale = g * jax.lax.rsqrt(var + _BN_EPS)
    return scale, b - mu * scale


def reference_forward_fused_policy(x, p):
    """Kernel dtype policy of the fused path: bf16 MXU operands, f32 epilogue,
    pre-BN biases dropped (cancelled), intermediates kept in f32."""
    n = x.shape[0]
    h1 = _dot_bf16(x, p["w1"])
    s1, t1 = _bn_fold_ref(h1, p["g1"], p["be1"], n)
    a1 = jnp.maximum(h1 * s1 + t1, 0.0)
    h2 = _dot_bf16(a1, p["w2"])
    s2, t2 = _bn_fold_ref(h2, p["g2"], p["be2"], n)
    a2 = jnp.maximum(h2 * s2 + t2, 0.0)
    return jnp.maximum(_dot_bf16(a2, p["w3"]) + p["b3"], 0.0)


def reference_forward_three_pass_policy(x, p):
    """Kernel dtype policy of the 3-pass path: additionally round-trips h1/h2
    through bf16 (stats taken from the f32 values before the round-trip)."""
    n = x.shape[0]
    h1 = _dot_bf16(x, p["w1"])
    s1, t1 = _bn_fold_ref(h1, p["g1"], p["be1"], n)
    h1 = h1.astype(jnp.bfloat16).astype(jnp.float32)
    a1 = jnp.maximum(h1 * s1 + t1, 0.0)
    h2 = _dot_bf16(a1, p["w2"])
    s2, t2 = _bn_fold_ref(h2, p["g2"], p["be2"], n)
    h2 = h2.astype(jnp.bfloat16).astype(jnp.float32)
    a2 = jnp.maximum(h2 * s2 + t2, 0.0)
    return jnp.maximum(_dot_bf16(a2, p["w3"]) + p["b3"], 0.0)


if __name__ == "__main__":
    # Small shapes consistent with the DANN Domain_Classifier MLP.
    N, D_in, H1, H2, D_out = 256, 32, 64, 32, 8

    key = jax.random.PRNGKey(0)
    kx, kp = jax.random.split(key)
    x = jax.random.normal(kx, (N, D_in), dtype=jnp.float32)
    params = init_params(kp, D_in, H1, H2, D_out)

    # Fast path: auto-selects the fused single-kernel variant at these sizes.
    out_fused = jax.block_until_ready(domain_classifier_forward(x, params))
    assert out_fused.shape == (N, D_out)

    # Fallback path: force the batch-tiled 3-pass variant with a >1 grid.
    out_3p = jax.block_until_ready(
        domain_classifier_forward(x, params, mode="three_pass", batch_tile=64))
    assert out_3p.shape == (N, D_out)

    # Tight checks against references that mirror each kernel's dtype policy.
    ref_fused = reference_forward_fused_policy(x, params)
    ref_3p = reference_forward_three_pass_policy(x, params)
    assert jnp.allclose(out_fused, ref_fused, atol=5e-3, rtol=5e-3), (
        "fused max |diff|:", float(jnp.max(jnp.abs(out_fused - ref_fused))))
    assert jnp.allclose(out_3p, ref_3p, atol=1e-2, rtol=1e-2), (
        "3-pass max |diff|:", float(jnp.max(jnp.abs(out_3p - ref_3p))))

    # Loose sanity check against exact f32 PyTorch semantics (bf16 MXU drift).
    ref_f32 = reference_forward_f32(x, params)
    assert jnp.allclose(out_fused, ref_f32, atol=1e-1, rtol=1e-1)
    assert jnp.allclose(out_3p, ref_f32, atol=1e-1, rtol=1e-1)

    print("KERNEL_OK")
</pallas_src>

<mosaic_0001>
module attributes {stable_mosaic.version = 11 : i64} {
  func.func @_fused_kernel(%arg0: i32, %arg1: memref<256x32xf32, #tpu.memory_space<vmem>>, %arg2: memref<32x128xbf16, #tpu.memory_space<vmem>>, %arg3: memref<128x128xbf16, #tpu.memory_space<vmem>>, %arg4: memref<128x128xbf16, #tpu.memory_space<vmem>>, %arg5: memref<1x128xf32, #tpu.memory_space<vmem>>, %arg6: memref<1x128xf32, #tpu.memory_space<vmem>>, %arg7: memref<1x128xf32, #tpu.memory_space<vmem>>, %arg8: memref<1x128xf32, #tpu.memory_space<vmem>>, %arg9: memref<1x128xf32, #tpu.memory_space<vmem>>, %arg10: memref<256x128xf32, #tpu.memory_space<vmem>>, %arg11: memref<256x128xf32, #tpu.memory_space<vmem>>, %arg12: memref<256x128xf32, #tpu.memory_space<vmem>>) attributes {dimension_semantics = [#tpu.dimension_semantics<arbitrary>], iteration_bounds = array<i64: 1>, scalar_prefetch = 0 : i64, scratch_operands = 2 : i64, tpu.core_type = #tpu.core_type<tc>, window_params = [{pipeline_mode = #tpu.pipeline_mode<synchronous>, transform_indices = @transform_0, window_bounds = array<i64: 256, 32>}, {pipeline_mode = #tpu.pipeline_mode<synchronous>, transform_indices = @transform_1, window_bounds = array<i64: 32, 128>}, {pipeline_mode = #tpu.pipeline_mode<synchronous>, transform_indices = @transform_2, window_bounds = array<i64: 128, 128>}, {pipeline_mode = #tpu.pipeline_mode<synchronous>, transform_indices = @transform_3, window_bounds = array<i64: 128, 128>}, {pipeline_mode = #tpu.pipeline_mode<synchronous>, transform_indices = @transform_4, window_bounds = array<i64: 1, 128>}, {pipeline_mode = #tpu.pipeline_mode<synchronous>, transform_indices = @transform_5, window_bounds = array<i64: 1, 128>}, {pipeline_mode = #tpu.pipeline_mode<synchronous>, transform_indices = @transform_6, window_bounds = array<i64: 1, 128>}, {pipeline_mode = #tpu.pipeline_mode<synchronous>, transform_indices = @transform_7, window_bounds = array<i64: 1, 128>}, {pipeline_mode = #tpu.pipeline_mode<synchronous>, transform_indices = @transform_8, window_bounds = array<i64: 1, 128>}, {pipeline_mode = #tpu.pipeline_mode<synchronous>, transform_indices = @transform_9, window_bounds = array<i64: 256, 128>}]} {
    %c0 = arith.constant 0 : index
    %c0_0 = arith.constant 0 : index
    %0 = vector.load %arg1[%c0, %c0_0] : memref<256x32xf32, #tpu.memory_space<vmem>>, vector<256x32xf32>
    %1 = arith.truncf %0 : vector<256x32xf32> to vector<256x32xbf16>
    %c0_1 = arith.constant 0 : index
    %c0_2 = arith.constant 0 : index
    %2 = vector.load %arg2[%c0_1, %c0_2] : memref<32x128xbf16, #tpu.memory_space<vmem>>, vector<32x128xbf16>
    %cst = arith.constant dense<0.000000e+00> : vector<256x128xf32>
    %3 = tpu.matmul %1, %2, %cst {dimension_numbers = #tpu.dot_dimension_numbers<[1], [0], [0], [1], [0, 0, 1, 1], [], []>} : vector<256x32xbf16>, vector<32x128xbf16>, vector<256x128xf32> -> vector<256x128xf32>
    %c0_3 = arith.constant 0 : index
    %c0_4 = arith.constant 0 : index
    %4 = vector.load %arg11[%c0_3, %c0_4] : memref<256x128xf32, #tpu.memory_space<vmem>>, vector<256x128xf32>
    tpu.vector_store %arg11[%c0_3, %c0_4], %3 {strides = array<i32>} : memref<256x128xf32, #tpu.memory_space<vmem>>, vector<256x128xf32>,
    %c0_5 = arith.constant 0 : index
    %c0_6 = arith.constant 0 : index
    %5 = vector.load %arg11[%c0_5, %c0_6] : memref<256x128xf32, #tpu.memory_space<vmem>>, vector<256x128xf32>
    %cst_7 = arith.constant dense<0.000000e+00> : vector<128xf32>
    %6 = vector.multi_reduction <add>, %5, %cst_7 [0] : vector<256x128xf32> to vector<128xf32>
    %7 = vector.shape_cast %6 : vector<128xf32> to vector<1x128xf32>
    %cst_8 = arith.constant 3.906250e-03 : f32
    %8 = vector.broadcast %cst_8 : f32 to vector<1x128xf32>
    %9 = arith.mulf %7, %8 : vector<1x128xf32>
    %10 = arith.mulf %5, %5 : vector<256x128xf32>
    %cst_9 = arith.constant dense<0.000000e+00> : vector<128xf32>
    %11 = vector.multi_reduction <add>, %10, %cst_9 [0] : vector<256x128xf32> to vector<128xf32>
    %12 = vector.shape_cast %11 : vector<128xf32> to vector<1x128xf32>
    %cst_10 = arith.constant 3.906250e-03 : f32
    %13 = vector.broadcast %cst_10 : f32 to vector<1x128xf32>
    %14 = arith.mulf %12, %13 : vector<1x128xf32>
    %15 = arith.mulf %9, %9 : vector<1x128xf32>
    %16 = arith.subf %14, %15 : vector<1x128xf32>
    %cst_11 = arith.constant 0.000000e+00 : f32
    %17 = vector.broadcast %cst_11 : f32 to vector<1x128xf32>
    %18 = arith.maximumf %16, %17 : vector<1x128xf32>
    %c0_12 = arith.constant 0 : index
    %c0_13 = arith.constant 0 : index
    %19 = vector.load %arg5[%c0_12, %c0_13] : memref<1x128xf32, #tpu.memory_space<vmem>>, vector<1x128xf32>
    %cst_14 = arith.constant 9.99999974E-6 : f32
    %20 = vector.broadcast %cst_14 : f32 to vector<1x128xf32>
    %21 = arith.addf %18, %20 : vector<1x128xf32>
    %22 = math.rsqrt %21 : vector<1x128xf32>
    %23 = arith.mulf %19, %22 : vector<1x128xf32>
    %c0_15 = arith.constant 0 : index
    %c0_16 = arith.constant 0 : index
    %24 = vector.load %arg6[%c0_15, %c0_16] : memref<1x128xf32, #tpu.memory_space<vmem>>, vector<1x128xf32>
    %25 = arith.mulf %9, %23 : vector<1x128xf32>
    %26 = arith.subf %24, %25 : vector<1x128xf32>
    %27 = vector.broadcast %23 : vector<1x128xf32> to vector<256x128xf32>
    %28 = arith.mulf %5, %27 : vector<256x128xf32>
    %29 = vector.broadcast %26 : vector<1x128xf32> to vector<256x128xf32>
    %30 = arith.addf %28, %29 : vector<256x128xf32>
    %cst_17 = arith.constant 0.000000e+00 : f32
    %31 = vector.broadcast %cst_17 : f32 to vector<256x128xf32>
    %32 = arith.maximumf %30, %31 : vector<256x128xf32>
    %33 = arith.truncf %32 : vector<256x128xf32> to vector<256x128xbf16>
    %c0_18 = arith.constant 0 : index
    %c0_19 = arith.constant 0 : index
    %34 = vector.load %arg3[%c0_18, %c0_19] : memref<128x128xbf16, #tpu.memory_space<vmem>>, vector<128x128xbf16>
    %cst_20 = arith.constant dense<0.000000e+00> : vector<256x128xf32>
    %35 = tpu.matmul %33, %34, %cst_20 {dimension_numbers = #tpu.dot_dimension_numbers<[1], [0], [0], [1], [0, 0, 1, 1], [], []>} : vector<256x128xbf16>, vector<128x128xbf16>, vector<256x128xf32> -> vector<256x128xf32>
    %c0_21 = arith.constant 0 : index
    %c0_22 = arith.constant 0 : index
    %36 = vector.load %arg12[%c0_21, %c0_22] : memref<256x128xf32, #tpu.memory_space<vmem>>, vector<256x128xf32>
    tpu.vector_store %arg12[%c0_21, %c0_22], %35 {strides = array<i32>} : memref<256x128xf32, #tpu.memory_space<vmem>>, vector<256x128xf32>,
    %c0_23 = arith.constant 0 : index
    %c0_24 = arith.constant 0 : index
    %37 = vector.load %arg12[%c0_23, %c0_24] : memref<256x128xf32, #tpu.memory_space<vmem>>, vector<256x128xf32>
    %cst_25 = arith.constant dense<0.000000e+00> : vector<128xf32>
    %38 = vector.multi_reduction <add>, %37, %cst_25 [0] : vector<256x128xf32> to vector<128xf32>
    %39 = vector.shape_cast %38 : vector<128xf32> to vector<1x128xf32>
    %cst_26 = arith.constant 3.906250e-03 : f32
    %40 = vector.broadcast %cst_26 : f32 to vector<1x128xf32>
    %41 = arith.mulf %39, %40 : vector<1x128xf32>
    %42 = arith.mulf %37, %37 : vector<256x128xf32>
    %cst_27 = arith.constant dense<0.000000e+00> : vector<128xf32>
    %43 = vector.multi_reduction <add>, %42, %cst_27 [0] : vector<256x128xf32> to vector<128xf32>
    %44 = vector.shape_cast %43 : vector<128xf32> to vector<1x128xf32>
    %cst_28 = arith.constant 3.906250e-03 : f32
    %45 = vector.broadcast %cst_28 : f32 to vector<1x128xf32>
    %46 = arith.mulf %44, %45 : vector<1x128xf32>
    %47 = arith.mulf %41, %41 : vector<1x128xf32>
    %48 = arith.subf %46, %47 : vector<1x128xf32>
    %cst_29 = arith.constant 0.000000e+00 : f32
    %49 = vector.broadcast %cst_29 : f32 to vector<1x128xf32>
    %50 = arith.maximumf %48, %49 : vector<1x128xf32>
    %c0_30 = arith.constant 0 : index
    %c0_31 = arith.constant 0 : index
    %51 = vector.load %arg7[%c0_30, %c0_31] : memref<1x128xf32, #tpu.memory_space<vmem>>, vector<1x128xf32>
    %cst_32 = arith.constant 9.99999974E-6 : f32
    %52 = vector.broadcast %cst_32 : f32 to vector<1x128xf32>
    %53 = arith.addf %50, %52 : vector<1x128xf32>
    %54 = math.rsqrt %53 : vector<1x128xf32>
    %55 = arith.mulf %51, %54 : vector<1x128xf32>
    %c0_33 = arith.constant 0 : index
    %c0_34 = arith.constant 0 : index
    %56 = vector.load %arg8[%c0_33, %c0_34] : memref<1x128xf32, #tpu.memory_space<vmem>>, vector<1x128xf32>
    %57 = arith.mulf %41, %55 : vector<1x128xf32>
    %58 = arith.subf %56, %57 : vector<1x128xf32>
    %59 = vector.broadcast %55 : vector<1x128xf32> to vector<256x128xf32>
    %60 = arith.mulf %37, %59 : vector<256x128xf32>
    %61 = vector.broadcast %58 : vector<1x128xf32> to vector<256x128xf32>
    %62 = arith.addf %60, %61 : vector<256x128xf32>
    %cst_35 = arith.constant 0.000000e+00 : f32
    %63 = vector.broadcast %cst_35 : f32 to vector<256x128xf32>
    %64 = arith.maximumf %62, %63 : vector<256x128xf32>
    %65 = arith.truncf %64 : vector<256x128xf32> to vector<256x128xbf16>
    %c0_36 = arith.constant 0 : index
    %c0_37 = arith.constant 0 : index
    %66 = vector.load %arg4[%c0_36, %c0_37] : memref<128x128xbf16, #tpu.memory_space<vmem>>, vector<128x128xbf16>
    %cst_38 = arith.constant dense<0.000000e+00> : vector<256x128xf32>
    %67 = tpu.matmul %65, %66, %cst_38 {dimension_numbers = #tpu.dot_dimension_numbers<[1], [0], [0], [1], [0, 0, 1, 1], [], []>} : vector<256x128xbf16>, vector<128x128xbf16>, vector<256x128xf32> -> vector<256x128xf32>
    %c0_39 = arith.constant 0 : index
    %c0_40 = arith.constant 0 : index
    %68 = vector.load %arg9[%c0_39, %c0_40] : memref<1x128xf32, #tpu.memory_space<vmem>>, vector<1x128xf32>
    %69 = vector.broadcast %68 : vector<1x128xf32> to vector<256x128xf32>
    %70 = arith.addf %67, %69 : vector<256x128xf32>
    %cst_41 = arith.constant 0.000000e+00 : f32
    %71 = vector.broadcast %cst_41 : f32 to vector<256x128xf32>
    %72 = arith.maximumf %70, %71 : vector<256x128xf32>
    %c0_42 = arith.constant 0 : index
    %c0_43 = arith.constant 0 : index
    %73 = vector.load %arg10[%c0_42, %c0_43] : memref<256x128xf32, #tpu.memory_space<vmem>>, vector<256x128xf32>
    tpu.vector_store %arg10[%c0_42, %c0_43], %72 {strides = array<i32>} : memref<256x128xf32, #tpu.memory_space<vmem>>, vector<256x128xf32>,
    return
  }
  func.func @transform_0(%arg0: i32) -> (i32, i32) {
    %c0_i32 = arith.constant 0 : i32
    %c0_i32_0 = arith.constant 0 : i32
    %c0_i32_1 = arith.constant 0 : i32
    return %c0_i32, %c0_i32_0 : i32, i32
  }
  func.func @transform_1(%arg0: i32) -> (i32, i32) {
    %c0_i32 = arith.constant 0 : i32
    %c0_i32_0 = arith.constant 0 : i32
    %c0_i32_1 = arith.constant 0 : i32
    return %c0_i32, %c0_i32_0 : i32, i32
  }
  func.func @transform_2(%arg0: i32) -> (i32, i32) {
    %c0_i32 = arith.constant 0 : i32
    %c0_i32_0 = arith.constant 0 : i32
    %c0_i32_1 = arith.constant 0 : i32
    return %c0_i32, %c0_i32_0 : i32, i32
  }
  func.func @transform_3(%arg0: i32) -> (i32, i32) {
    %c0_i32 = arith.constant 0 : i32
    %c0_i32_0 = arith.constant 0 : i32
    %c0_i32_1 = arith.constant 0 : i32
    return %c0_i32, %c0_i32_0 : i32, i32
  }
  func.func @transform_4(%arg0: i32) -> (i32, i32) {
    %c0_i32 = arith.constant 0 : i32
    %c0_i32_0 = arith.constant 0 : i32
    %c0_i32_1 = arith.constant 0 : i32
    return %c0_i32, %c0_i32_0 : i32, i32
  }
  func.func @transform_5(%arg0: i32) -> (i32, i32) {
    %c0_i32 = arith.constant 0 : i32
    %c0_i32_0 = arith.constant 0 : i32
    %c0_i32_1 = arith.constant 0 : i32
    return %c0_i32, %c0_i32_0 : i32, i32
  }
  func.func @transform_6(%arg0: i32) -> (i32, i32) {
    %c0_i32 = arith.constant 0 : i32
    %c0_i32_0 = arith.constant 0 : i32
    %c0_i32_1 = arith.constant 0 : i32
    return %c0_i32, %c0_i32_0 : i32, i32
  }
  func.func @transform_7(%arg0: i32) -> (i32, i32) {
    %c0_i32 = arith.constant 0 : i32
    %c0_i32_0 = arith.constant 0 : i32
    %c0_i32_1 = arith.constant 0 : i32
    return %c0_i32, %c0_i32_0 : i32, i32
  }
  func.func @transform_8(%arg0: i32) -> (i32, i32) {
    %c0_i32 = arith.constant 0 : i32
    %c0_i32_0 = arith.constant 0 : i32
    %c0_i32_1 = arith.constant 0 : i32
    return %c0_i32, %c0_i32_0 : i32, i32
  }
  func.func @transform_9(%arg0: i32) -> (i32, i32) {
    %c0_i32 = arith.constant 0 : i32
    %c0_i32_0 = arith.constant 0 : i32
    %c0_i32_1 = arith.constant 0 : i32
    return %c0_i32, %c0_i32_0 : i32, i32
  }
}

</mosaic_0001>

<llo_original>
// kernel: tpu_custom_call.1
$region0: #{tpu_custom_call.1}
  #allocation0 [shape = 'u32[]', space=smem, size = 0x4, offset = 0x4, fixed_abs, tag = 'smem constant byte address 0x4 - core index']
  #allocation1 [shape = 'u32[144,128]{1,0:T(1,128)}', space=vmem, size = 0x12000, scoped, tag = 'internal scratch']
  #allocation2 [shape = 'f32[256,128]{1,0:T(8,128)}', space=vmem, size = 0x20000, scoped, tag = 'scratch operand']
  #allocation3 [shape = 'f32[256,128]{1,0:T(8,128)}', space=vmem, size = 0x20000, scoped, tag = 'scratch operand']
  %s0 = inlined_call_operand.vmem [shape: f32[256,32], index: 0, kind: input, shape index: {}]
  %s1 = inlined_call_operand.vmem [shape: bf16[32,128], index: 1, kind: input, shape index: {}]
  %s2 = inlined_call_operand.vmem [shape: bf16[128,128], index: 2, kind: input, shape index: {}]
  %s3 = inlined_call_operand.vmem [shape: bf16[128,128], index: 3, kind: input, shape index: {}]
  %s4 = inlined_call_operand.vmem [shape: f32[1,128], index: 4, kind: input, shape index: {}]
  %s5 = inlined_call_operand.vmem [shape: f32[1,128], index: 5, kind: input, shape index: {}]
  %s6 = inlined_call_operand.vmem [shape: f32[1,128], index: 6, kind: input, shape index: {}]
  %s7 = inlined_call_operand.vmem [shape: f32[1,128], index: 7, kind: input, shape index: {}]
  %s8 = inlined_call_operand.vmem [shape: f32[1,128], index: 8, kind: input, shape index: {}]
  %s9 = inlined_call_operand.hbm [shape: f32[256,128], index: 9, kind: output, shape index: {}]
  %s10 = sld [smem:[#allocation0]]
  $region46: #{tpu_custom_call.1} parent=0
    _
  %s12 = ssub.s32 1, %s10
  %s13 = scalar_select 0, %s12, %s10
  $region1: #{tpu_custom_call.1} parent=0
    #allocation4 [shape = 'u8[131072]{0}', space=vmem, size = 0x20000, scoped, tag = 'output window, operand 0, single buffered']
    #allocation5 [shape = 's32[1]{0}', space=sflag, size = 0x4, scoped, tag = 'scoped memory for tpu_custom_call.1']
    %14 = vsyncpa [#allocation5], 0
    // Predicated region
    $region2: #{tpu_custom_call.1} parent=1 // pred_check
      _
    $region3: #{tpu_custom_call.1} parent=1 // pred_check_branch
      %16 = sbr.rel (0) target = $region5
    $region4: #{tpu_custom_call.1} parent=1 // pred_region
      _
    $region5: #{tpu_custom_call.1} parent=1 // pred_fallthru
      _
    // Predicated region
    $region6: #{tpu_custom_call.1} parent=1 // pred_check
      _
    $region7: #{tpu_custom_call.1} parent=1 // pred_check_branch
      %18 = sbr.rel (0) target = $region9
    $region8: #{tpu_custom_call.1} parent=1 // pred_region
      _
    $region9: #{tpu_custom_call.1} parent=1 // pred_fallthru
      _
    // Predicated region
    $region10: #{tpu_custom_call.1} parent=1 // pred_check
      _
    $region11: #{tpu_custom_call.1} parent=1 // pred_check_branch
      %20 = sbr.rel (0) target = $region13
    $region12: #{tpu_custom_call.1} parent=1 // pred_region
      _
    $region13: #{tpu_custom_call.1} parent=1 // pred_fallthru
      _
    // Predicated region
    $region14: #{tpu_custom_call.1} parent=1 // pred_check
      _
    $region15: #{tpu_custom_call.1} parent=1 // pred_check_branch
      %22 = sbr.rel (0) target = $region17
    $region16: #{tpu_custom_call.1} parent=1 // pred_region
      _
    $region17: #{tpu_custom_call.1} parent=1 // pred_fallthru
      _
    // Predicated region
    $region18: #{tpu_custom_call.1} parent=1 // pred_check
      _
    $region19: #{tpu_custom_call.1} parent=1 // pred_check_branch
      %24 = sbr.rel (0) target = $region21
    $region20: #{tpu_custom_call.1} parent=1 // pred_region
      _
    $region21: #{tpu_custom_call.1} parent=1 // pred_fallthru
      _
    // Predicated region
    $region22: #{tpu_custom_call.1} parent=1 // pred_check
      _
    $region23: #{tpu_custom_call.1} parent=1 // pred_check_branch
      %26 = sbr.rel (0) target = $region25
    $region24: #{tpu_custom_call.1} parent=1 // pred_region
      _
    $region25: #{tpu_custom_call.1} parent=1 // pred_fallthru
      _
    // Predicated region
    $region26: #{tpu_custom_call.1} parent=1 // pred_check
      _
    $region27: #{tpu_custom_call.1} parent=1 // pred_check_branch
      %28 = sbr.rel (0) target = $region29
    $region28: #{tpu_custom_call.1} parent=1 // pred_region
      _
    $region29: #{tpu_custom_call.1} parent=1 // pred_fallthru
      _
    // Predicated region
    $region30: #{tpu_custom_call.1} parent=1 // pred_check
      _
    $region31: #{tpu_custom_call.1} parent=1 // pred_check_branch
      %30 = sbr.rel (0) target = $region33
    $region32: #{tpu_custom_call.1} parent=1 // pred_region
      _
    $region33: #{tpu_custom_call.1} parent=1 // pred_fallthru
      _
    // Predicated region
    $region34: #{tpu_custom_call.1} parent=1 // pred_check
      _
    $region35: #{tpu_custom_call.1} parent=1 // pred_check_branch
      %32 = sbr.rel (0) target = $region37
    $region36: #{tpu_custom_call.1} parent=1 // pred_region
      _
    $region37: #{tpu_custom_call.1} parent=1 // pred_fallthru
      _
    %v34 = vld [vmem:[%s0] sm:$0xff]
    %v35 = vld [vmem:[%s0 + $0x8] sm:$0xff]
    %v36 = vld [vmem:[%s0 + $0x10] sm:$0xff]
    %v37 = vld [vmem:[%s0 + $0x18] sm:$0xff]
    %v38 = vld [vmem:[%s0 + $0x20] sm:$0xff]
    %v39 = vld [vmem:[%s0 + $0x28] sm:$0xff]
    %v40 = vld [vmem:[%s0 + $0x30] sm:$0xff]
    %v41 = vld [vmem:[%s0 + $0x38] sm:$0xff]
    %v42 = vld [vmem:[%s0 + $0x40] sm:$0xff]
    %v43 = vld [vmem:[%s0 + $0x48] sm:$0xff]
    %v44 = vld [vmem:[%s0 + $0x50] sm:$0xff]
    %v45 = vld [vmem:[%s0 + $0x58] sm:$0xff]
    %v46 = vld [vmem:[%s0 + $0x60] sm:$0xff]
    %v47 = vld [vmem:[%s0 + $0x68] sm:$0xff]
    %v48 = vld [vmem:[%s0 + $0x70] sm:$0xff]
    %v49 = vld [vmem:[%s0 + $0x78] sm:$0xff]
    %v50 = vld [vmem:[%s0 + $0x80] sm:$0xff]
    %v51 = vld [vmem:[%s0 + $0x88] sm:$0xff]
    %v52 = vld [vmem:[%s0 + $0x90] sm:$0xff]
    %v53 = vld [vmem:[%s0 + $0x98] sm:$0xff]
    %v54 = vld [vmem:[%s0 + $0xa0] sm:$0xff]
    %v55 = vld [vmem:[%s0 + $0xa8] sm:$0xff]
    %v56 = vld [vmem:[%s0 + $0xb0] sm:$0xff]
    %v57 = vld [vmem:[%s0 + $0xb8] sm:$0xff]
    %v58 = vld [vmem:[%s0 + $0xc0] sm:$0xff]
    %v59 = vld [vmem:[%s0 + $0xc8] sm:$0xff]
    %v60 = vld [vmem:[%s0 + $0xd0] sm:$0xff]
    %v61 = vld [vmem:[%s0 + $0xd8] sm:$0xff]
    %v62 = vld [vmem:[%s0 + $0xe0] sm:$0xff]
    %v63 = vld [vmem:[%s0 + $0xe8] sm:$0xff]
    %v64 = vld [vmem:[%s0 + $0xf0] sm:$0xff]
    %v65 = vld [vmem:[%s0 + $0xf8] sm:$0xff]
    %v66 = vpack.c.bf16 %v35, %v34
    %v67 = vpack.c.bf16 %v37, %v36
    %v68 = vpack.c.bf16 %v39, %v38
    %v69 = vpack.c.bf16 %v41, %v40
    %v70 = vpack.c.bf16 %v43, %v42
    %v71 = vpack.c.bf16 %v45, %v44
    %v72 = vpack.c.bf16 %v47, %v46
    %v73 = vpack.c.bf16 %v49, %v48
    %v74 = vpack.c.bf16 %v51, %v50
    %v75 = vpack.c.bf16 %v53, %v52
    %v76 = vpack.c.bf16 %v55, %v54
    %v77 = vpack.c.bf16 %v57, %v56
    %v78 = vpack.c.bf16 %v59, %v58
    %v79 = vpack.c.bf16 %v61, %v60
    %v80 = vpack.c.bf16 %v63, %v62
    %v81 = vpack.c.bf16 %v65, %v64
    %v82 = vld [vmem:[%s1] sm:$0xf]
    %v83 = vld [vmem:[%s1 + $0x4] sm:$0xf]
    %v84 = vld [vmem:[%s1 + $0x8] sm:$0xf]
    %v85 = vld [vmem:[%s1 + $0xc] sm:$0xf]
    %v90 = vunpack.c.l.b16 %v82
    %v91 = vunpack.c.l.b16 %v83
    %v92 = vunpack.c.l.b16 %v84
    %v93 = vunpack.c.l.b16 %v85
    %v94 = vpack.c.b16 %v91, %v90
    %v95 = vpack.c.b16 %v93, %v92
    %vm98 = vcmask 261120
    %v100 = vsel %vm98, %v66, 0
    %v103 = vsel %vm98, %v67, 0
    %v106 = vsel %vm98, %v68, 0
    %v109 = vsel %vm98, %v69, 0
    %v112 = vsel %vm98, %v70, 0
    %v115 = vsel %vm98, %v71, 0
    %v118 = vsel %vm98, %v72, 0
    %v121 = vsel %vm98, %v73, 0
    %v124 = vsel %vm98, %v74, 0
    %v127 = vsel %vm98, %v75, 0
    %v130 = vsel %vm98, %v76, 0
    %v133 = vsel %vm98, %v77, 0
    %v136 = vsel %vm98, %v78, 0
    %v139 = vsel %vm98, %v79, 0
    %v142 = vsel %vm98, %v80, 0
    %v145 = vsel %vm98, %v81, 0
    %147 = vmatprep.subr.bf16.mxu0 0
    %148 = vmatpush1.bf16.msra.mxu0 %v94
    %149 = vmatprep.subr.bf16.mxu0 0
    %150 = vmatpush1.bf16.msra.mxu0 %v95
    %151 = vmatprep.subr.bf16.mxu0 0
    %152 = vmatpush1.bf16.msra.mxu0 0
    %153 = vmatprep.subr.bf16.mxu0 0
    %154 = vmatpush1.bf16.msra.mxu0 0
    %155 = vmatprep.subr.bf16.mxu0 0
    %156 = vmatpush1.bf16.msra.mxu0 0
    %157 = vmatprep.subr.bf16.mxu0 0
    %158 = vmatpush1.bf16.msra.mxu0 0
    %159 = vmatprep.subr.bf16.mxu0 0
    %160 = vmatpush1.bf16.msra.mxu0 0
    %161 = vmatprep.subr.bf16.mxu0 0
    %162 = vmatpush1.bf16.msra.mxu0 0
    %163 = vmatprep.subr.bf16.mxu0 0
    %164 = vmatpush1.bf16.msra.mxu0 0
    %165 = vmatprep.subr.bf16.mxu0 0
    %166 = vmatpush1.bf16.msra.mxu0 0
    %167 = vmatprep.subr.bf16.mxu0 0
    %168 = vmatpush1.bf16.msra.mxu0 0
    %169 = vmatprep.subr.bf16.mxu0 0
    %170 = vmatpush1.bf16.msra.mxu0 0
    %171 = vmatprep.subr.bf16.mxu0 0
    %172 = vmatpush1.bf16.msra.mxu0 0
    %173 = vmatprep.subr.bf16.mxu0 0
    %174 = vmatpush1.bf16.msra.mxu0 0
    %175 = vmatprep.subr.bf16.mxu0 0
    %176 = vmatpush1.bf16.msra.mxu0 0
    %177 = vmatprep.subr.bf16.mxu0 0
    %178 = vmatpush1.bf16.msra.mxu0 0
    %179 = vmatprep.mubr.bf16.mxu0 0
    %180 = vmatmul.mubr.bf16.gmra.mrb[0].mxu0 %v100
    %v181 = vpop.f32.mrb[0].mxu0
    %v182 = vadd.f32 0.0, %v181
    %v183 = vpop.f32.mrb[0].mxu0
    %v184 = vpop.f32.mrb[0].mxu0
    %v185 = vadd.f32 0.0, %v184
    %v186 = vpop.f32.mrb[0].mxu0
    %187 = vmatprep.mubr.bf16.mxu0 0
    %188 = vmatmul.mubr.bf16.gmra.mrb[0].mxu0 %v103
    %v189 = vpop.f32.mrb[0].mxu0
    %v190 = vadd.f32 0.0, %v189
    %v191 = vpop.f32.mrb[0].mxu0
    %v192 = vpop.f32.mrb[0].mxu0
    %v193 = vadd.f32 0.0, %v192
    %v194 = vpop.f32.mrb[0].mxu0
    %195 = vmatprep.mubr.bf16.mxu0 0
    %196 = vmatmul.mubr.bf16.gmra.mrb[0].mxu0 %v106
    %v197 = vpop.f32.mrb[0].mxu0
    %v198 = vadd.f32 0.0, %v197
    %v199 = vpop.f32.mrb[0].mxu0
    %v200 = vpop.f32.mrb[0].mxu0
    %v201 = vadd.f32 0.0, %v200
    %v202 = vpop.f32.mrb[0].mxu0
    %203 = vmatprep.mubr.bf16.mxu0 0
    %204 = vmatmul.mubr.bf16.gmra.mrb[0].mxu0 %v109
    %v205 = vpop.f32.mrb[0].mxu0
    %v206 = vadd.f32 0.0, %v205
    %v207 = vpop.f32.mrb[0].mxu0
    %v208 = vpop.f32.mrb[0].mxu0
    %v209 = vadd.f32 0.0, %v208
    %v210 = vpop.f32.mrb[0].mxu0
    %211 = vmatprep.mubr.bf16.mxu0 0
    %212 = vmatmul.mubr.bf16.gmra.mrb[0].mxu0 %v112
    %v213 = vpop.f32.mrb[0].mxu0
    %v214 = vadd.f32 0.0, %v213
    %v215 = vpop.f32.mrb[0].mxu0
    %v216 = vpop.f32.mrb[0].mxu0
    %v217 = vadd.f32 0.0, %v216
    %v218 = vpop.f32.mrb[0].mxu0
    %219 = vmatprep.mubr.bf16.mxu0 0
    %220 = vmatmul.mubr.bf16.gmra.mrb[0].mxu0 %v115
    %v221 = vpop.f32.mrb[0].mxu0
    %v222 = vadd.f32 0.0, %v221
    %v223 = vpop.f32.mrb[0].mxu0
    %v224 = vpop.f32.mrb[0].mxu0
    %v225 = vadd.f32 0.0, %v224
    %v226 = vpop.f32.mrb[0].mxu0
    %227 = vmatprep.mubr.bf16.mxu0 0
    %228 = vmatmul.mubr.bf16.gmra.mrb[0].mxu0 %v118
    %v229 = vpop.f32.mrb[0].mxu0
    %v230 = vadd.f32 0.0, %v229
    %v231 = vpop.f32.mrb[0].mxu0
    %v232 = vpop.f32.mrb[0].mxu0
    %v233 = vadd.f32 0.0, %v232
    %v234 = vpop.f32.mrb[0].mxu0
    %235 = vmatprep.mubr.bf16.mxu0 0
    %236 = vmatmul.mubr.bf16.gmra.mrb[0].mxu0 %v121
    %v237 = vpop.f32.mrb[0].mxu0
    %v238 = vadd.f32 0.0, %v237
    %v239 = vpop.f32.mrb[0].mxu0
    %v240 = vpop.f32.mrb[0].mxu0
    %v241 = vadd.f32 0.0, %v240
    %v242 = vpop.f32.mrb[0].mxu0
    %243 = vmatprep.mubr.bf16.mxu0 0
    %244 = vmatmul.mubr.bf16.gmra.mrb[0].mxu0 %v124
    %v245 = vpop.f32.mrb[0].mxu0
    %v246 = vadd.f32 0.0, %v245
    %v247 = vpop.f32.mrb[0].mxu0
    %v248 = vpop.f32.mrb[0].mxu0
    %v249 = vadd.f32 0.0, %v248
    %v250 = vpop.f32.mrb[0].mxu0
    %251 = vmatprep.mubr.bf16.mxu0 0
    %252 = vmatmul.mubr.bf16.gmra.mrb[0].mxu0 %v127
    %v253 = vpop.f32.mrb[0].mxu0
    %v254 = vadd.f32 0.0, %v253
    %v255 = vpop.f32.mrb[0].mxu0
    %v256 = vpop.f32.mrb[0].mxu0
    %v257 = vadd.f32 0.0, %v256
    %v258 = vpop.f32.mrb[0].mxu0
    %259 = vmatprep.mubr.bf16.mxu0 0
    %260 = vmatmul.mubr.bf16.gmra.mrb[0].mxu0 %v130
    %v261 = vpop.f32.mrb[0].mxu0
    %v262 = vadd.f32 0.0, %v261
    %v263 = vpop.f32.mrb[0].mxu0
    %v264 = vpop.f32.mrb[0].mxu0
    %v265 = vadd.f32 0.0, %v264
    %v266 = vpop.f32.mrb[0].mxu0
    %267 = vmatprep.mubr.bf16.mxu0 0
    %268 = vmatmul.mubr.bf16.gmra.mrb[0].mxu0 %v133
    %v269 = vpop.f32.mrb[0].mxu0
    %v270 = vadd.f32 0.0, %v269
    %v271 = vpop.f32.mrb[0].mxu0
    %v272 = vpop.f32.mrb[0].mxu0
    %v273 = vadd.f32 0.0, %v272
    %v274 = vpop.f32.mrb[0].mxu0
    %275 = vmatprep.mubr.bf16.mxu0 0
    %276 = vmatmul.mubr.bf16.gmra.mrb[0].mxu0 %v136
    %v277 = vpop.f32.mrb[0].mxu0
    %v278 = vadd.f32 0.0, %v277
    %v279 = vpop.f32.mrb[0].mxu0
    %v280 = vpop.f32.mrb[0].mxu0
    %v281 = vadd.f32 0.0, %v280
    %v282 = vpop.f32.mrb[0].mxu0
    %283 = vmatprep.mubr.bf16.mxu0 0
    %284 = vmatmul.mubr.bf16.gmra.mrb[0].mxu0 %v139
    %v285 = vpop.f32.mrb[0].mxu0
    %v286 = vadd.f32 0.0, %v285
    %v287 = vpop.f32.mrb[0].mxu0
    %v288 = vpop.f32.mrb[0].mxu0
    %v289 = vadd.f32 0.0, %v288
    %v290 = vpop.f32.mrb[0].mxu0
    %291 = vmatprep.mubr.bf16.mxu0 0
    %292 = vmatmul.mubr.bf16.gmra.mrb[0].mxu0 %v142
    %v293 = vpop.f32.mrb[0].mxu0
    %v294 = vadd.f32 0.0, %v293
    %v295 = vpop.f32.mrb[0].mxu0
    %v296 = vpop.f32.mrb[0].mxu0
    %v297 = vadd.f32 0.0, %v296
    %v298 = vpop.f32.mrb[0].mxu0
    %299 = vmatprep.mubr.bf16.mxu0 0
    %300 = vmatmul.mubr.bf16.gmra.mrb[0].mxu0 %v145
    %v301 = vpop.f32.mrb[0].mxu0
    %v302 = vadd.f32 0.0, %v301
    %v303 = vpop.f32.mrb[0].mxu0
    %v304 = vpop.f32.mrb[0].mxu0
    %v305 = vadd.f32 0.0, %v304
    %v306 = vpop.f32.mrb[0].mxu0
    %307 = vdwg.mxu0
    %308 = vst [vmem:[#allocation2] sm:$0xff] %v182
    %309 = vst [vmem:[#allocation2 + $0x8] sm:$0xff] %v185
    %310 = vst [vmem:[#allocation2 + $0x10] sm:$0xff] %v190
    %311 = vst [vmem:[#allocation2 + $0x18] sm:$0xff] %v193
    %312 = vst [vmem:[#allocation2 + $0x20] sm:$0xff] %v198
    %313 = vst [vmem:[#allocation2 + $0x28] sm:$0xff] %v201
    %314 = vst [vmem:[#allocation2 + $0x30] sm:$0xff] %v206
    %315 = vst [vmem:[#allocation2 + $0x38] sm:$0xff] %v209
    %316 = vst [vmem:[#allocation2 + $0x40] sm:$0xff] %v214
    %317 = vst [vmem:[#allocation2 + $0x48] sm:$0xff] %v217
    %318 = vst [vmem:[#allocation2 + $0x50] sm:$0xff] %v222
    %319 = vst [vmem:[#allocation2 + $0x58] sm:$0xff] %v225
    %320 = vst [vmem:[#allocation2 + $0x60] sm:$0xff] %v230
    %321 = vst [vmem:[#allocation2 + $0x68] sm:$0xff] %v233
    %322 = vst [vmem:[#allocation2 + $0x70] sm:$0xff] %v238
    %323 = vst [vmem:[#allocation2 + $0x78] sm:$0xff] %v241
    %324 = vst [vmem:[#allocation2 + $0x80] sm:$0xff] %v246
    %325 = vst [vmem:[#allocation2 + $0x88] sm:$0xff] %v249
    %326 = vst [vmem:[#allocation2 + $0x90] sm:$0xff] %v254
    %327 = vst [vmem:[#allocation2 + $0x98] sm:$0xff] %v257
    %328 = vst [vmem:[#allocation2 + $0xa0] sm:$0xff] %v262
    %329 = vst [vmem:[#allocation2 + $0xa8] sm:$0xff] %v265
    %330 = vst [vmem:[#allocation2 + $0xb0] sm:$0xff] %v270
    %331 = vst [vmem:[#allocation2 + $0xb8] sm:$0xff] %v273
    %332 = vst [vmem:[#allocation2 + $0xc0] sm:$0xff] %v278
    %333 = vst [vmem:[#allocation2 + $0xc8] sm:$0xff] %v281
    %334 = vst [vmem:[#allocation2 + $0xd0] sm:$0xff] %v286
    %335 = vst [vmem:[#allocation2 + $0xd8] sm:$0xff] %v289
    %336 = vst [vmem:[#allocation2 + $0xe0] sm:$0xff] %v294
    %337 = vst [vmem:[#allocation2 + $0xe8] sm:$0xff] %v297
    %338 = vst [vmem:[#allocation2 + $0xf0] sm:$0xff] %v302
    %339 = vst [vmem:[#allocation2 + $0xf8] sm:$0xff] %v305
    %v340 = vld [vmem:[#allocation2] sm:$0xff]
    %v341 = vld [vmem:[#allocation2 + $0x8] sm:$0xff]
    %v342 = vld [vmem:[#allocation2 + $0x10] sm:$0xff]
    %v343 = vld [vmem:[#allocation2 + $0x18] sm:$0xff]
    %v344 = vld [vmem:[#allocation2 + $0x20] sm:$0xff]
    %v345 = vld [vmem:[#allocation2 + $0x28] sm:$0xff]
    %v346 = vld [vmem:[#allocation2 + $0x30] sm:$0xff]
    %v347 = vld [vmem:[#allocation2 + $0x38] sm:$0xff]
    %v348 = vld [vmem:[#allocation2 + $0x40] sm:$0xff]
    %v349 = vld [vmem:[#allocation2 + $0x48] sm:$0xff]
    %v350 = vld [vmem:[#allocation2 + $0x50] sm:$0xff]
    %v351 = vld [vmem:[#allocation2 + $0x58] sm:$0xff]
    %v352 = vld [vmem:[#allocation2 + $0x60] sm:$0xff]
    %v353 = vld [vmem:[#allocation2 + $0x68] sm:$0xff]
    %v354 = vld [vmem:[#allocation2 + $0x70] sm:$0xff]
    %v355 = vld [vmem:[#allocation2 + $0x78] sm:$0xff]
    %v356 = vld [vmem:[#allocation2 + $0x80] sm:$0xff]
    %v357 = vld [vmem:[#allocation2 + $0x88] sm:$0xff]
    %v358 = vld [vmem:[#allocation2 + $0x90] sm:$0xff]
    %v359 = vld [vmem:[#allocation2 + $0x98] sm:$0xff]
    %v360 = vld [vmem:[#allocation2 + $0xa0] sm:$0xff]
    %v361 = vld [vmem:[#allocation2 + $0xa8] sm:$0xff]
    %v362 = vld [vmem:[#allocation2 + $0xb0] sm:$0xff]
    %v363 = vld [vmem:[#allocation2 + $0xb8] sm:$0xff]
    %v364 = vld [vmem:[#allocation2 + $0xc0] sm:$0xff]
    %v365 = vld [vmem:[#allocation2 + $0xc8] sm:$0xff]
    %v366 = vld [vmem:[#allocation2 + $0xd0] sm:$0xff]
    %v367 = vld [vmem:[#allocation2 + $0xd8] sm:$0xff]
    %v368 = vld [vmem:[#allocation2 + $0xe0] sm:$0xff]
    %v369 = vld [vmem:[#allocation2 + $0xe8] sm:$0xff]
    %v370 = vld [vmem:[#allocation2 + $0xf0] sm:$0xff]
    %v371 = vld [vmem:[#allocation2 + $0xf8] sm:$0xff]
    %v372 = vadd.f32 %v340, %v341
    %v373 = vadd.f32 %v372, %v342
    %v374 = vadd.f32 %v373, %v343
    %v375 = vadd.f32 %v374, %v344
    %v376 = vadd.f32 %v375, %v345
    %v377 = vadd.f32 %v376, %v346
    %v378 = vadd.f32 %v377, %v347
    %v379 = vadd.f32 %v378, %v348
    %v380 = vadd.f32 %v379, %v349
    %v381 = vadd.f32 %v380, %v350
    %v382 = vadd.f32 %v381, %v351
    %v383 = vadd.f32 %v382, %v352
    %v384 = vadd.f32 %v383, %v353
    %v385 = vadd.f32 %v384, %v354
    %v386 = vadd.f32 %v385, %v355
    %v387 = vadd.f32 %v386, %v356
    %v388 = vadd.f32 %v387, %v357
    %v389 = vadd.f32 %v388, %v358
    %v390 = vadd.f32 %v389, %v359
    %v391 = vadd.f32 %v390, %v360
    %v392 = vadd.f32 %v391, %v361
    %v393 = vadd.f32 %v392, %v362
    %v394 = vadd.f32 %v393, %v363
    %v395 = vadd.f32 %v394, %v364
    %v396 = vadd.f32 %v395, %v365
    %v397 = vadd.f32 %v396, %v366
    %v398 = vadd.f32 %v397, %v367
    %v399 = vadd.f32 %v398, %v368
    %v400 = vadd.f32 %v399, %v369
    %v401 = vadd.f32 %v400, %v370
    %v402 = vadd.f32 %v401, %v371
    %v403 = vrot.slane %v402, 4
    %v404 = vadd.f32 %v402, %v403
    %v405 = vrot.slane %v404, 2
    %v406 = vadd.f32 %v404, %v405
    %v407 = vrot.slane %v406, 1
    %v408 = vadd.f32 %v406, %v407
    %v409 = vmul.f32 %v408, 0.00390625
    %v410 = vmul.f32 %v340, %v340
    %v411 = vmul.f32 %v341, %v341
    %v412 = vmul.f32 %v342, %v342
    %v413 = vmul.f32 %v343, %v343
    %v414 = vmul.f32 %v344, %v344
    %v415 = vmul.f32 %v345, %v345
    %v416 = vmul.f32 %v346, %v346
    %v417 = vmul.f32 %v347, %v347
    %v418 = vmul.f32 %v348, %v348
    %v419 = vmul.f32 %v349, %v349
    %v420 = vmul.f32 %v350, %v350
    %v421 = vmul.f32 %v351, %v351
    %v422 = vmul.f32 %v352, %v352
    %v423 = vmul.f32 %v353, %v353
    %v424 = vmul.f32 %v354, %v354
    %v425 = vmul.f32 %v355, %v355
    %v426 = vmul.f32 %v356, %v356
    %v427 = vmul.f32 %v357, %v357
    %v428 = vmul.f32 %v358, %v358
    %v429 = vmul.f32 %v359, %v359
    %v430 = vmul.f32 %v360, %v360
    %v431 = vmul.f32 %v361, %v361
    %v432 = vmul.f32 %v362, %v362
    %v433 = vmul.f32 %v363, %v363
    %v434 = vmul.f32 %v364, %v364
    %v435 = vmul.f32 %v365, %v365
    %v436 = vmul.f32 %v366, %v366
    %v437 = vmul.f32 %v367, %v367
    %v438 = vmul.f32 %v368, %v368
    %v439 = vmul.f32 %v369, %v369
    %v440 = vmul.f32 %v370, %v370
    %v441 = vmul.f32 %v371, %v371
    %v442 = vadd.f32 %v410, %v411
    %v443 = vadd.f32 %v442, %v412
    %v444 = vadd.f32 %v443, %v413
    %v445 = vadd.f32 %v444, %v414
    %v446 = vadd.f32 %v445, %v415
    %v447 = vadd.f32 %v446, %v416
    %v448 = vadd.f32 %v447, %v417
    %v449 = vadd.f32 %v448, %v418
    %v450 = vadd.f32 %v449, %v419
    %v451 = vadd.f32 %v450, %v420
    %v452 = vadd.f32 %v451, %v421
    %v453 = vadd.f32 %v452, %v422
    %v454 = vadd.f32 %v453, %v423
    %v455 = vadd.f32 %v454, %v424
    %v456 = vadd.f32 %v455, %v425
    %v457 = vadd.f32 %v456, %v426
    %v458 = vadd.f32 %v457, %v427
    %v459 = vadd.f32 %v458, %v428
    %v460 = vadd.f32 %v459, %v429
    %v461 = vadd.f32 %v460, %v430
    %v462 = vadd.f32 %v461, %v431
    %v463 = vadd.f32 %v462, %v432
    %v464 = vadd.f32 %v463, %v433
    %v465 = vadd.f32 %v464, %v434
    %v466 = vadd.f32 %v465, %v435
    %v467 = vadd.f32 %v466, %v436
    %v468 = vadd.f32 %v467, %v437
    %v469 = vadd.f32 %v468, %v438
    %v470 = vadd.f32 %v469, %v439
    %v471 = vadd.f32 %v470, %v440
    %v472 = vadd.f32 %v471, %v441
    %v473 = vrot.slane %v472, 4
    %v474 = vadd.f32 %v472, %v473
    %v475 = vrot.slane %v474, 2
    %v476 = vadd.f32 %v474, %v475
    %v477 = vrot.slane %v476, 1
    %v478 = vadd.f32 %v476, %v477
    %v479 = vmul.f32 %v478, 0.00390625
    %v480 = vmul.f32 %v409, %v409
    %v481 = vsub.f32 %v479, %v480
    %v482 = vmax.f32 %v481, 0.0
    %v483 = vld [vmem:[%s4] sm:$0x1]
    %v484 = vadd.f32 %v482, 1e-05
    %v485 = vrsqrt.pop %v484
    %v486 = vmul.f32 %v483, %v485
    %v487 = vld [vmem:[%s5] sm:$0x1]
    %v488 = vmul.f32 %v409, %v486
    %v489 = vsub.f32 %v487, %v488
    %v491 = vlaneseq
    %v492 = vshrl.u32 %v491, 7
    %v493 = vsub.s32 0, %v492
    %v494 = vrot.slane %v486, %v493
    %v496 = vmul.f32 %v340, %v494
    %v497 = vmul.f32 %v341, %v494
    %v498 = vmul.f32 %v342, %v494
    %v499 = vmul.f32 %v343, %v494
    %v500 = vmul.f32 %v344, %v494
    %v501 = vmul.f32 %v345, %v494
    %v502 = vmul.f32 %v346, %v494
    %v503 = vmul.f32 %v347, %v494
    %v504 = vmul.f32 %v348, %v494
    %v505 = vmul.f32 %v349, %v494
    %v506 = vmul.f32 %v350, %v494
    %v507 = vmul.f32 %v351, %v494
    %v508 = vmul.f32 %v352, %v494
    %v509 = vmul.f32 %v353, %v494
    %v510 = vmul.f32 %v354, %v494
    %v511 = vmul.f32 %v355, %v494
    %v512 = vmul.f32 %v356, %v494
    %v513 = vmul.f32 %v357, %v494
    %v514 = vmul.f32 %v358, %v494
    %v515 = vmul.f32 %v359, %v494
    %v516 = vmul.f32 %v360, %v494
    %v517 = vmul.f32 %v361, %v494
    %v518 = vmul.f32 %v362, %v494
    %v519 = vmul.f32 %v363, %v494
    %v520 = vmul.f32 %v364, %v494
    %v521 = vmul.f32 %v365, %v494
    %v522 = vmul.f32 %v366, %v494
    %v523 = vmul.f32 %v367, %v494
    %v524 = vmul.f32 %v368, %v494
    %v525 = vmul.f32 %v369, %v494
    %v526 = vmul.f32 %v370, %v494
    %v527 = vmul.f32 %v371, %v494
    %v529 = vlaneseq
    %v530 = vshrl.u32 %v529, 7
    %v531 = vsub.s32 0, %v530
    %v532 = vrot.slane %v489, %v531
    %v534 = vadd.f32 %v496, %v532
    %v535 = vadd.f32 %v497, %v532
    %v536 = vadd.f32 %v498, %v532
    %v537 = vadd.f32 %v499, %v532
    %v538 = vadd.f32 %v500, %v532
    %v539 = vadd.f32 %v501, %v532
    %v540 = vadd.f32 %v502, %v532
    %v541 = vadd.f32 %v503, %v532
    %v542 = vadd.f32 %v504, %v532
    %v543 = vadd.f32 %v505, %v532
    %v544 = vadd.f32 %v506, %v532
    %v545 = vadd.f32 %v507, %v532
    %v546 = vadd.f32 %v508, %v532
    %v547 = vadd.f32 %v509, %v532
    %v548 = vadd.f32 %v510, %v532
    %v549 = vadd.f32 %v511, %v532
    %v550 = vadd.f32 %v512, %v532
    %v551 = vadd.f32 %v513, %v532
    %v552 = vadd.f32 %v514, %v532
    %v553 = vadd.f32 %v515, %v532
    %v554 = vadd.f32 %v516, %v532
    %v555 = vadd.f32 %v517, %v532
    %v556 = vadd.f32 %v518, %v532
    %v557 = vadd.f32 %v519, %v532
    %v558 = vadd.f32 %v520, %v532
    %v559 = vadd.f32 %v521, %v532
    %v560 = vadd.f32 %v522, %v532
    %v561 = vadd.f32 %v523, %v532
    %v562 = vadd.f32 %v524, %v532
    %v563 = vadd.f32 %v525, %v532
    %v564 = vadd.f32 %v526, %v532
    %v565 = vadd.f32 %v527, %v532
    %v566 = vmax.f32 %v534, 0.0
    %v567 = vmax.f32 %v535, 0.0
    %v568 = vmax.f32 %v536, 0.0
    %v569 = vmax.f32 %v537, 0.0
    %v570 = vmax.f32 %v538, 0.0
    %v571 = vmax.f32 %v539, 0.0
    %v572 = vmax.f32 %v540, 0.0
    %v573 = vmax.f32 %v541, 0.0
    %v574 = vmax.f32 %v542, 0.0
    %v575 = vmax.f32 %v543, 0.0
    %v576 = vmax.f32 %v544, 0.0
    %v577 = vmax.f32 %v545, 0.0
    %v578 = vmax.f32 %v546, 0.0
    %v579 = vmax.f32 %v547, 0.0
    %v580 = vmax.f32 %v548, 0.0
    %v581 = vmax.f32 %v549, 0.0
    %v582 = vmax.f32 %v550, 0.0
    %v583 = vmax.f32 %v551, 0.0
    %v584 = vmax.f32 %v552, 0.0
    %v585 = vmax.f32 %v553, 0.0
    %v586 = vmax.f32 %v554, 0.0
    %v587 = vmax.f32 %v555, 0.0
    %v588 = vmax.f32 %v556, 0.0
    %v589 = vmax.f32 %v557, 0.0
    %v590 = vmax.f32 %v558, 0.0
    %v591 = vmax.f32 %v559, 0.0
    %v592 = vmax.f32 %v560, 0.0
    %v593 = vmax.f32 %v561, 0.0
    %v594 = vmax.f32 %v562, 0.0
    %v595 = vmax.f32 %v563, 0.0
    %v596 = vmax.f32 %v564, 0.0
    %v597 = vmax.f32 %v565, 0.0
    %v598 = vpack.c.bf16 %v567, %v566
    %v599 = vpack.c.bf16 %v569, %v568
    %v600 = vpack.c.bf16 %v571, %v570
    %v601 = vpack.c.bf16 %v573, %v572
    %v602 = vpack.c.bf16 %v575, %v574
    %v603 = vpack.c.bf16 %v577, %v576
    %v604 = vpack.c.bf16 %v579, %v578
    %v605 = vpack.c.bf16 %v581, %v580
    %v606 = vpack.c.bf16 %v583, %v582
    %v607 = vpack.c.bf16 %v585, %v584
    %v608 = vpack.c.bf16 %v587, %v586
    %v609 = vpack.c.bf16 %v589, %v588
    %v610 = vpack.c.bf16 %v591, %v590
    %v611 = vpack.c.bf16 %v593, %v592
    %v612 = vpack.c.bf16 %v595, %v594
    %v613 = vpack.c.bf16 %v597, %v596
    %v614 = vld [vmem:[%s2] sm:$0xf]
    %v615 = vld [vmem:[%s2 + $0x4] sm:$0xf]
    %v616 = vld [vmem:[%s2 + $0x8] sm:$0xf]
    %v617 = vld [vmem:[%s2 + $0xc] sm:$0xf]
    %v618 = vld [vmem:[%s2 + $0x10] sm:$0xf]
    %v619 = vld [vmem:[%s2 + $0x14] sm:$0xf]
    %v620 = vld [vmem:[%s2 + $0x18] sm:$0xf]
    %v621 = vld [vmem:[%s2 + $0x1c] sm:$0xf]
    %v622 = vld [vmem:[%s2 + $0x20] sm:$0xf]
    %v623 = vld [vmem:[%s2 + $0x24] sm:$0xf]
    %v624 = vld [vmem:[%s2 + $0x28] sm:$0xf]
    %v625 = vld [vmem:[%s2 + $0x2c] sm:$0xf]
    %v626 = vld [vmem:[%s2 + $0x30] sm:$0xf]
    %v627 = vld [vmem:[%s2 + $0x34] sm:$0xf]
    %v628 = vld [vmem:[%s2 + $0x38] sm:$0xf]
    %v629 = vld [vmem:[%s2 + $0x3c] sm:$0xf]
    %v646 = vunpack.c.l.b16 %v614
    %v647 = vunpack.c.l.b16 %v615
    %v648 = vunpack.c.l.b16 %v616
    %v649 = vunpack.c.l.b16 %v617
    %v650 = vunpack.c.l.b16 %v618
    %v651 = vunpack.c.l.b16 %v619
    %v652 = vunpack.c.l.b16 %v620
    %v653 = vunpack.c.l.b16 %v621
    %v654 = vunpack.c.l.b16 %v622
    %v655 = vunpack.c.l.b16 %v623
    %v656 = vunpack.c.l.b16 %v624
    %v657 = vunpack.c.l.b16 %v625
    %v658 = vunpack.c.l.b16 %v626
    %v659 = vunpack.c.l.b16 %v627
    %v660 = vunpack.c.l.b16 %v628
    %v661 = vunpack.c.l.b16 %v629
    %v662 = vpack.c.b16 %v647, %v646
    %v663 = vpack.c.b16 %v649, %v648
    %v664 = vpack.c.b16 %v651, %v650
    %v665 = vpack.c.b16 %v653, %v652
    %v666 = vpack.c.b16 %v655, %v654
    %v667 = vpack.c.b16 %v657, %v656
    %v668 = vpack.c.b16 %v659, %v658
    %v669 = vpack.c.b16 %v661, %v660
    %678 = vmatprep.subr.bf16.mxu0 0
    %679 = vmatpush1.bf16.msra.mxu0 %v662
    %680 = vmatprep.subr.bf16.mxu0 0
    %681 = vmatpush1.bf16.msra.mxu0 %v663
    %682 = vmatprep.subr.bf16.mxu0 0
    %683 = vmatpush1.bf16.msra.mxu0 %v664
    %684 = vmatprep.subr.bf16.mxu0 0
    %685 = vmatpush1.bf16.msra.mxu0 %v665
    %686 = vmatprep.subr.bf16.mxu0 0
    %687 = vmatpush1.bf16.msra.mxu0 %v666
    %688 = vmatprep.subr.bf16.mxu0 0
    %689 = vmatpush1.bf16.msra.mxu0 %v667
    %690 = vmatprep.subr.bf16.mxu0 0
    %691 = vmatpush1.bf16.msra.mxu0 %v668
    %692 = vmatprep.subr.bf16.mxu0 0
    %693 = vmatpush1.bf16.msra.mxu0 %v669
    %694 = vmatprep.subr.bf16.mxu0 0
    %695 = vmatpush1.bf16.msra.mxu0 0
    %696 = vmatprep.subr.bf16.mxu0 0
    %697 = vmatpush1.bf16.msra.mxu0 0
    %698 = vmatprep.subr.bf16.mxu0 0
    %699 = vmatpush1.bf16.msra.mxu0 0
    %700 = vmatprep.subr.bf16.mxu0 0
    %701 = vmatpush1.bf16.msra.mxu0 0
    %702 = vmatprep.subr.bf16.mxu0 0
    %703 = vmatpush1.bf16.msra.mxu0 0
    %704 = vmatprep.subr.bf16.mxu0 0
    %705 = vmatpush1.bf16.msra.mxu0 0
    %706 = vmatprep.subr.bf16.mxu0 0
    %707 = vmatpush1.bf16.msra.mxu0 0
    %708 = vmatprep.subr.bf16.mxu0 0
    %709 = vmatpush1.bf16.msra.mxu0 0
    %710 = vmatprep.mubr.bf16.mxu0 0
    %711 = vmatmul.mubr.bf16.gmra.mrb[0].mxu0 %v598
    %v712 = vpop.f32.mrb[0].mxu0
    %v713 = vadd.f32 0.0, %v712
    %v714 = vpop.f32.mrb[0].mxu0
    %v715 = vpop.f32.mrb[0].mxu0
    %v716 = vadd.f32 0.0, %v715
    %v717 = vpop.f32.mrb[0].mxu0
    %718 = vmatprep.mubr.bf16.mxu0 0
    %719 = vmatmul.mubr.bf16.gmra.mrb[0].mxu0 %v599
    %v720 = vpop.f32.mrb[0].mxu0
    %v721 = vadd.f32 0.0, %v720
    %v722 = vpop.f32.mrb[0].mxu0
    %v723 = vpop.f32.mrb[0].mxu0
    %v724 = vadd.f32 0.0, %v723
    %v725 = vpop.f32.mrb[0].mxu0
    %726 = vmatprep.mubr.bf16.mxu0 0
    %727 = vmatmul.mubr.bf16.gmra.mrb[0].mxu0 %v600
    %v728 = vpop.f32.mrb[0].mxu0
    %v729 = vadd.f32 0.0, %v728
    %v730 = vpop.f32.mrb[0].mxu0
    %v731 = vpop.f32.mrb[0].mxu0
    %v732 = vadd.f32 0.0, %v731
    %v733 = vpop.f32.mrb[0].mxu0
    %734 = vmatprep.mubr.bf16.mxu0 0
    %735 = vmatmul.mubr.bf16.gmra.mrb[0].mxu0 %v601
    %v736 = vpop.f32.mrb[0].mxu0
    %v737 = vadd.f32 0.0, %v736
    %v738 = vpop.f32.mrb[0].mxu0
    %v739 = vpop.f32.mrb[0].mxu0
    %v740 = vadd.f32 0.0, %v739
    %v741 = vpop.f32.mrb[0].mxu0
    %742 = vmatprep.mubr.bf16.mxu0 0
    %743 = vmatmul.mubr.bf16.gmra.mrb[0].mxu0 %v602
    %v744 = vpop.f32.mrb[0].mxu0
    %v745 = vadd.f32 0.0, %v744
    %v746 = vpop.f32.mrb[0].mxu0
    %v747 = vpop.f32.mrb[0].mxu0
    %v748 = vadd.f32 0.0, %v747
    %v749 = vpop.f32.mrb[0].mxu0
    %750 = vmatprep.mubr.bf16.mxu0 0
    %751 = vmatmul.mubr.bf16.gmra.mrb[0].mxu0 %v603
    %v752 = vpop.f32.mrb[0].mxu0
    %v753 = vadd.f32 0.0, %v752
    %v754 = vpop.f32.mrb[0].mxu0
    %v755 = vpop.f32.mrb[0].mxu0
    %v756 = vadd.f32 0.0, %v755
    %v757 = vpop.f32.mrb[0].mxu0
    %758 = vmatprep.mubr.bf16.mxu0 0
    %759 = vmatmul.mubr.bf16.gmra.mrb[0].mxu0 %v604
    %v760 = vpop.f32.mrb[0].mxu0
    %v761 = vadd.f32 0.0, %v760
    %v762 = vpop.f32.mrb[0].mxu0
    %v763 = vpop.f32.mrb[0].mxu0
    %v764 = vadd.f32 0.0, %v763
    %v765 = vpop.f32.mrb[0].mxu0
    %766 = vmatprep.mubr.bf16.mxu0 0
    %767 = vmatmul.mubr.bf16.gmra.mrb[0].mxu0 %v605
    %v768 = vpop.f32.mrb[0].mxu0
    %v769 = vadd.f32 0.0, %v768
    %v770 = vpop.f32.mrb[0].mxu0
    %v771 = vpop.f32.mrb[0].mxu0
    %v772 = vadd.f32 0.0, %v771
    %v773 = vpop.f32.mrb[0].mxu0
    %774 = vmatprep.mubr.bf16.mxu0 0
    %775 = vmatmul.mubr.bf16.gmra.mrb[0].mxu0 %v606
    %v776 = vpop.f32.mrb[0].mxu0
    %v777 = vadd.f32 0.0, %v776
    %v778 = vpop.f32.mrb[0].mxu0
    %v779 = vpop.f32.mrb[0].mxu0
    %v780 = vadd.f32 0.0, %v779
    %v781 = vpop.f32.mrb[0].mxu0
    %782 = vmatprep.mubr.bf16.mxu0 0
    %783 = vmatmul.mubr.bf16.gmra.mrb[0].mxu0 %v607
    %v784 = vpop.f32.mrb[0].mxu0
    %v785 = vadd.f32 0.0, %v784
    %v786 = vpop.f32.mrb[0].mxu0
    %v787 = vpop.f32.mrb[0].mxu0
    %v788 = vadd.f32 0.0, %v787
    %v789 = vpop.f32.mrb[0].mxu0
    %790 = vmatprep.mubr.bf16.mxu0 0
    %791 = vmatmul.mubr.bf16.gmra.mrb[0].mxu0 %v608
    %v792 = vpop.f32.mrb[0].mxu0
    %v793 = vadd.f32 0.0, %v792
    %v794 = vpop.f32.mrb[0].mxu0
    %v795 = vpop.f32.mrb[0].mxu0
    %v796 = vadd.f32 0.0, %v795
    %v797 = vpop.f32.mrb[0].mxu0
    %798 = vmatprep.mubr.bf16.mxu0 0
    %799 = vmatmul.mubr.bf16.gmra.mrb[0].mxu0 %v609
    %v800 = vpop.f32.mrb[0].mxu0
    %v801 = vadd.f32 0.0, %v800
    %v802 = vpop.f32.mrb[0].mxu0
    %v803 = vpop.f32.mrb[0].mxu0
    %v804 = vadd.f32 0.0, %v803
    %v805 = vpop.f32.mrb[0].mxu0
    %806 = vmatprep.mubr.bf16.mxu0 0
    %807 = vmatmul.mubr.bf16.gmra.mrb[0].mxu0 %v610
    %v808 = vpop.f32.mrb[0].mxu0
    %v809 = vadd.f32 0.0, %v808
    %v810 = vpop.f32.mrb[0].mxu0
    %v811 = vpop.f32.mrb[0].mxu0
    %v812 = vadd.f32 0.0, %v811
    %v813 = vpop.f32.mrb[0].mxu0
    %814 = vmatprep.mubr.bf16.mxu0 0
    %815 = vmatmul.mubr.bf16.gmra.mrb[0].mxu0 %v611
    %v816 = vpop.f32.mrb[0].mxu0
    %v817 = vadd.f32 0.0, %v816
    %v818 = vpop.f32.mrb[0].mxu0
    %v819 = vpop.f32.mrb[0].mxu0
    %v820 = vadd.f32 0.0, %v819
    %v821 = vpop.f32.mrb[0].mxu0
    %822 = vmatprep.mubr.bf16.mxu0 0
    %823 = vmatmul.mubr.bf16.gmra.mrb[0].mxu0 %v612
    %v824 = vpop.f32.mrb[0].mxu0
    %v825 = vadd.f32 0.0, %v824
    %v826 = vpop.f32.mrb[0].mxu0
    %v827 = vpop.f32.mrb[0].mxu0
    %v828 = vadd.f32 0.0, %v827
    %v829 = vpop.f32.mrb[0].mxu0
    %830 = vmatprep.mubr.bf16.mxu0 0
    %831 = vmatmul.mubr.bf16.gmra.mrb[0].mxu0 %v613
    %v832 = vpop.f32.mrb[0].mxu0
    %v833 = vadd.f32 0.0, %v832
    %v834 = vpop.f32.mrb[0].mxu0
    %v835 = vpop.f32.mrb[0].mxu0
    %v836 = vadd.f32 0.0, %v835
    %v837 = vpop.f32.mrb[0].mxu0
    %838 = vdwg.mxu0
    %839 = vst [vmem:[#allocation3] sm:$0xff] %v713
    %840 = vst [vmem:[#allocation3 + $0x8] sm:$0xff] %v716
    %841 = vst [vmem:[#allocation3 + $0x10] sm:$0xff] %v721
    %842 = vst [vmem:[#allocation3 + $0x18] sm:$0xff] %v724
    %843 = vst [vmem:[#allocation3 + $0x20] sm:$0xff] %v729
    %844 = vst [vmem:[#allocation3 + $0x28] sm:$0xff] %v732
    %845 = vst [vmem:[#allocation3 + $0x30] sm:$0xff] %v737
    %846 = vst [vmem:[#allocation3 + $0x38] sm:$0xff] %v740
    %847 = vst [vmem:[#allocation3 + $0x40] sm:$0xff] %v745
    %848 = vst [vmem:[#allocation3 + $0x48] sm:$0xff] %v748
    %849 = vst [vmem:[#allocation3 + $0x50] sm:$0xff] %v753
    %850 = vst [vmem:[#allocation3 + $0x58] sm:$0xff] %v756
    %851 = vst [vmem:[#allocation3 + $0x60] sm:$0xff] %v761
    %852 = vst [vmem:[#allocation3 + $0x68] sm:$0xff] %v764
    %853 = vst [vmem:[#allocation3 + $0x70] sm:$0xff] %v769
    %854 = vst [vmem:[#allocation3 + $0x78] sm:$0xff] %v772
    %855 = vst [vmem:[#allocation3 + $0x80] sm:$0xff] %v777
    %856 = vst [vmem:[#allocation3 + $0x88] sm:$0xff] %v780
    %857 = vst [vmem:[#allocation3 + $0x90] sm:$0xff] %v785
    %858 = vst [vmem:[#allocation3 + $0x98] sm:$0xff] %v788
    %859 = vst [vmem:[#allocation3 + $0xa0] sm:$0xff] %v793
    %860 = vst [vmem:[#allocation3 + $0xa8] sm:$0xff] %v796
    %861 = vst [vmem:[#allocation3 + $0xb0] sm:$0xff] %v801
    %862 = vst [vmem:[#allocation3 + $0xb8] sm:$0xff] %v804
    %863 = vst [vmem:[#allocation3 + $0xc0] sm:$0xff] %v809
    %864 = vst [vmem:[#allocation3 + $0xc8] sm:$0xff] %v812
    %865 = vst [vmem:[#allocation3 + $0xd0] sm:$0xff] %v817
    %866 = vst [vmem:[#allocation3 + $0xd8] sm:$0xff] %v820
    %867 = vst [vmem:[#allocation3 + $0xe0] sm:$0xff] %v825
    %868 = vst [vmem:[#allocation3 + $0xe8] sm:$0xff] %v828
    %869 = vst [vmem:[#allocation3 + $0xf0] sm:$0xff] %v833
    %870 = vst [vmem:[#allocation3 + $0xf8] sm:$0xff] %v836
    %v871 = vld [vmem:[#allocation3] sm:$0xff]
    %v872 = vld [vmem:[#allocation3 + $0x8] sm:$0xff]
    %v873 = vld [vmem:[#allocation3 + $0x10] sm:$0xff]
    %v874 = vld [vmem:[#allocation3 + $0x18] sm:$0xff]
    %v875 = vld [vmem:[#allocation3 + $0x20] sm:$0xff]
    %v876 = vld [vmem:[#allocation3 + $0x28] sm:$0xff]
    %v877 = vld [vmem:[#allocation3 + $0x30] sm:$0xff]
    %v878 = vld [vmem:[#allocation3 + $0x38] sm:$0xff]
    %v879 = vld [vmem:[#allocation3 + $0x40] sm:$0xff]
    %v880 = vld [vmem:[#allocation3 + $0x48] sm:$0xff]
    %v881 = vld [vmem:[#allocation3 + $0x50] sm:$0xff]
    %v882 = vld [vmem:[#allocation3 + $0x58] sm:$0xff]
    %v883 = vld [vmem:[#allocation3 + $0x60] sm:$0xff]
    %v884 = vld [vmem:[#allocation3 + $0x68] sm:$0xff]
    %v885 = vld [vmem:[#allocation3 + $0x70] sm:$0xff]
    %v886 = vld [vmem:[#allocation3 + $0x78] sm:$0xff]
    %v887 = vld [vmem:[#allocation3 + $0x80] sm:$0xff]
    %v888 = vld [vmem:[#allocation3 + $0x88] sm:$0xff]
    %v889 = vld [vmem:[#allocation3 + $0x90] sm:$0xff]
    %v890 = vld [vmem:[#allocation3 + $0x98] sm:$0xff]
    %v891 = vld [vmem:[#allocation3 + $0xa0] sm:$0xff]
    %v892 = vld [vmem:[#allocation3 + $0xa8] sm:$0xff]
    %v893 = vld [vmem:[#allocation3 + $0xb0] sm:$0xff]
    %v894 = vld [vmem:[#allocation3 + $0xb8] sm:$0xff]
    %v895 = vld [vmem:[#allocation3 + $0xc0] sm:$0xff]
    %v896 = vld [vmem:[#allocation3 + $0xc8] sm:$0xff]
    %v897 = vld [vmem:[#allocation3 + $0xd0] sm:$0xff]
    %v898 = vld [vmem:[#allocation3 + $0xd8] sm:$0xff]
    %v899 = vld [vmem:[#allocation3 + $0xe0] sm:$0xff]
    %v900 = vld [vmem:[#allocation3 + $0xe8] sm:$0xff]
    %v901 = vld [vmem:[#allocation3 + $0xf0] sm:$0xff]
    %v902 = vld [vmem:[#allocation3 + $0xf8] sm:$0xff]
    %v903 = vadd.f32 %v871, %v872
    %v904 = vadd.f32 %v903, %v873
    %v905 = vadd.f32 %v904, %v874
    %v906 = vadd.f32 %v905, %v875
    %v907 = vadd.f32 %v906, %v876
    %v908 = vadd.f32 %v907, %v877
    %v909 = vadd.f32 %v908, %v878
    %v910 = vadd.f32 %v909, %v879
    %v911 = vadd.f32 %v910, %v880
    %v912 = vadd.f32 %v911, %v881
    %v913 = vadd.f32 %v912, %v882
    %v914 = vadd.f32 %v913, %v883
    %v915 = vadd.f32 %v914, %v884
    %v916 = vadd.f32 %v915, %v885
    %v917 = vadd.f32 %v916, %v886
    %v918 = vadd.f32 %v917, %v887
    %v919 = vadd.f32 %v918, %v888
    %v920 = vadd.f32 %v919, %v889
    %v921 = vadd.f32 %v920, %v890
    %v922 = vadd.f32 %v921, %v891
    %v923 = vadd.f32 %v922, %v892
    %v924 = vadd.f32 %v923, %v893
    %v925 = vadd.f32 %v924, %v894
    %v926 = vadd.f32 %v925, %v895
    %v927 = vadd.f32 %v926, %v896
    %v928 = vadd.f32 %v927, %v897
    %v929 = vadd.f32 %v928, %v898
    %v930 = vadd.f32 %v929, %v899
    %v931 = vadd.f32 %v930, %v900
    %v932 = vadd.f32 %v931, %v901
    %v933 = vadd.f32 %v932, %v902
    %v934 = vrot.slane %v933, 4
    %v935 = vadd.f32 %v933, %v934
    %v936 = vrot.slane %v935, 2
    %v937 = vadd.f32 %v935, %v936
    %v938 = vrot.slane %v937, 1
    %v939 = vadd.f32 %v937, %v938
    %v940 = vmul.f32 %v939, 0.00390625
    %v941 = vmul.f32 %v871, %v871
    %v942 = vmul.f32 %v872, %v872
    %v943 = vmul.f32 %v873, %v873
    %v944 = vmul.f32 %v874, %v874
    %v945 = vmul.f32 %v875, %v875
    %v946 = vmul.f32 %v876, %v876
    %v947 = vmul.f32 %v877, %v877
    %v948 = vmul.f32 %v878, %v878
    %v949 = vmul.f32 %v879, %v879
    %v950 = vmul.f32 %v880, %v880
    %v951 = vmul.f32 %v881, %v881
    %v952 = vmul.f32 %v882, %v882
    %v953 = vmul.f32 %v883, %v883
    %v954 = vmul.f32 %v884, %v884
    %v955 = vmul.f32 %v885, %v885
    %v956 = vmul.f32 %v886, %v886
    %v957 = vmul.f32 %v887, %v887
    %v958 = vmul.f32 %v888, %v888
    %v959 = vmul.f32 %v889, %v889
    %v960 = vmul.f32 %v890, %v890
    %v961 = vmul.f32 %v891, %v891
    %v962 = vmul.f32 %v892, %v892
    %v963 = vmul.f32 %v893, %v893
    %v964 = vmul.f32 %v894, %v894
    %v965 = vmul.f32 %v895, %v895
    %v966 = vmul.f32 %v896, %v896
    %v967 = vmul.f32 %v897, %v897
    %v968 = vmul.f32 %v898, %v898
    %v969 = vmul.f32 %v899, %v899
    %v970 = vmul.f32 %v900, %v900
    %v971 = vmul.f32 %v901, %v901
    %v972 = vmul.f32 %v902, %v902
    %v973 = vadd.f32 %v941, %v942
    %v974 = vadd.f32 %v973, %v943
    %v975 = vadd.f32 %v974, %v944
    %v976 = vadd.f32 %v975, %v945
    %v977 = vadd.f32 %v976, %v946
    %v978 = vadd.f32 %v977, %v947
    %v979 = vadd.f32 %v978, %v948
    %v980 = vadd.f32 %v979, %v949
    %v981 = vadd.f32 %v980, %v950
    %v982 = vadd.f32 %v981, %v951
    %v983 = vadd.f32 %v982, %v952
    %v984 = vadd.f32 %v983, %v953
    %v985 = vadd.f32 %v984, %v954
    %v986 = vadd.f32 %v985, %v955
    %v987 = vadd.f32 %v986, %v956
    %v988 = vadd.f32 %v987, %v957
    %v989 = vadd.f32 %v988, %v958
    %v990 = vadd.f32 %v989, %v959
    %v991 = vadd.f32 %v990, %v960
    %v992 = vadd.f32 %v991, %v961
    %v993 = vadd.f32 %v992, %v962
    %v994 = vadd.f32 %v993, %v963
    %v995 = vadd.f32 %v994, %v964
    %v996 = vadd.f32 %v995, %v965
    %v997 = vadd.f32 %v996, %v966
    %v998 = vadd.f32 %v997, %v967
    %v999 = vadd.f32 %v998, %v968
    %v1000 = vadd.f32 %v999, %v969
    %v1001 = vadd.f32 %v1000, %v970
    %v1002 = vadd.f32 %v1001, %v971
    %v1003 = vadd.f32 %v1002, %v972
    %v1004 = vrot.slane %v1003, 4
    %v1005 = vadd.f32 %v1003, %v1004
    %v1006 = vrot.slane %v1005, 2
    %v1007 = vadd.f32 %v1005, %v1006
    %v1008 = vrot.slane %v1007, 1
    %v1009 = vadd.f32 %v1007, %v1008
    %v1010 = vmul.f32 %v1009, 0.00390625
    %v1011 = vmul.f32 %v940, %v940
    %v1012 = vsub.f32 %v1010, %v1011
    %v1013 = vmax.f32 %v1012, 0.0
    %v1014 = vld [vmem:[%s6] sm:$0x1]
    %v1015 = vadd.f32 %v1013, 1e-05
    %v1016 = vrsqrt.pop %v1015
    %v1017 = vmul.f32 %v1014, %v1016
    %v1018 = vld [vmem:[%s7] sm:$0x1]
    %v1019 = vmul.f32 %v940, %v1017
    %v1020 = vsub.f32 %v1018, %v1019
    %v1022 = vlaneseq
    %v1023 = vshrl.u32 %v1022, 7
    %v1024 = vsub.s32 0, %v1023
    %v1025 = vrot.slane %v1017, %v1024
    %v1027 = vmul.f32 %v871, %v1025
    %v1028 = vmul.f32 %v872, %v1025
    %v1029 = vmul.f32 %v873, %v1025
    %v1030 = vmul.f32 %v874, %v1025
    %v1031 = vmul.f32 %v875, %v1025
    %v1032 = vmul.f32 %v876, %v1025
    %v1033 = vmul.f32 %v877, %v1025
    %v1034 = vmul.f32 %v878, %v1025
    %v1035 = vmul.f32 %v879, %v1025
    %v1036 = vmul.f32 %v880, %v1025
    %v1037 = vmul.f32 %v881, %v1025
    %v1038 = vmul.f32 %v882, %v1025
    %v1039 = vmul.f32 %v883, %v1025
    %v1040 = vmul.f32 %v884, %v1025
    %v1041 = vmul.f32 %v885, %v1025
    %v1042 = vmul.f32 %v886, %v1025
    %v1043 = vmul.f32 %v887, %v1025
    %v1044 = vmul.f32 %v888, %v1025
    %v1045 = vmul.f32 %v889, %v1025
    %v1046 = vmul.f32 %v890, %v1025
    %v1047 = vmul.f32 %v891, %v1025
    %v1048 = vmul.f32 %v892, %v1025
    %v1049 = vmul.f32 %v893, %v1025
    %v1050 = vmul.f32 %v894, %v1025
    %v1051 = vmul.f32 %v895, %v1025
    %v1052 = vmul.f32 %v896, %v1025
    %v1053 = vmul.f32 %v897, %v1025
    %v1054 = vmul.f32 %v898, %v1025
    %v1055 = vmul.f32 %v899, %v1025
    %v1056 = vmul.f32 %v900, %v1025
    %v1057 = vmul.f32 %v901, %v1025
    %v1058 = vmul.f32 %v902, %v1025
    %v1060 = vlaneseq
    %v1061 = vshrl.u32 %v1060, 7
    %v1062 = vsub.s32 0, %v1061
    %v1063 = vrot.slane %v1020, %v1062
    %v1065 = vadd.f32 %v1027, %v1063
    %v1066 = vadd.f32 %v1028, %v1063
    %v1067 = vadd.f32 %v1029, %v1063
    %v1068 = vadd.f32 %v1030, %v1063
    %v1069 = vadd.f32 %v1031, %v1063
    %v1070 = vadd.f32 %v1032, %v1063
    %v1071 = vadd.f32 %v1033, %v1063
    %v1072 = vadd.f32 %v1034, %v1063
    %v1073 = vadd.f32 %v1035, %v1063
    %v1074 = vadd.f32 %v1036, %v1063
    %v1075 = vadd.f32 %v1037, %v1063
    %v1076 = vadd.f32 %v1038, %v1063
    %v1077 = vadd.f32 %v1039, %v1063
    %v1078 = vadd.f32 %v1040, %v1063
    %v1079 = vadd.f32 %v1041, %v1063
    %v1080 = vadd.f32 %v1042, %v1063
    %v1081 = vadd.f32 %v1043, %v1063
    %v1082 = vadd.f32 %v1044, %v1063
    %v1083 = vadd.f32 %v1045, %v1063
    %v1084 = vadd.f32 %v1046, %v1063
    %v1085 = vadd.f32 %v1047, %v1063
    %v1086 = vadd.f32 %v1048, %v1063
    %v1087 = vadd.f32 %v1049, %v1063
    %v1088 = vadd.f32 %v1050, %v1063
    %v1089 = vadd.f32 %v1051, %v1063
    %v1090 = vadd.f32 %v1052, %v1063
    %v1091 = vadd.f32 %v1053, %v1063
    %v1092 = vadd.f32 %v1054, %v1063
    %v1093 = vadd.f32 %v1055, %v1063
    %v1094 = vadd.f32 %v1056, %v1063
    %v1095 = vadd.f32 %v1057, %v1063
    %v1096 = vadd.f32 %v1058, %v1063
    %v1097 = vmax.f32 %v1065, 0.0
    %v1098 = vmax.f32 %v1066, 0.0
    %v1099 = vmax.f32 %v1067, 0.0
    %v1100 = vmax.f32 %v1068, 0.0
    %v1101 = vmax.f32 %v1069, 0.0
    %v1102 = vmax.f32 %v1070, 0.0
    %v1103 = vmax.f32 %v1071, 0.0
    %v1104 = vmax.f32 %v1072, 0.0
    %v1105 = vmax.f32 %v1073, 0.0
    %v1106 = vmax.f32 %v1074, 0.0
    %v1107 = vmax.f32 %v1075, 0.0
    %v1108 = vmax.f32 %v1076, 0.0
    %v1109 = vmax.f32 %v1077, 0.0
    %v1110 = vmax.f32 %v1078, 0.0
    %v1111 = vmax.f32 %v1079, 0.0
    %v1112 = vmax.f32 %v1080, 0.0
    %v1113 = vmax.f32 %v1081, 0.0
    %v1114 = vmax.f32 %v1082, 0.0
    %v1115 = vmax.f32 %v1083, 0.0
    %v1116 = vmax.f32 %v1084, 0.0
    %v1117 = vmax.f32 %v1085, 0.0
    %v1118 = vmax.f32 %v1086, 0.0
    %v1119 = vmax.f32 %v1087, 0.0
    %v1120 = vmax.f32 %v1088, 0.0
    %v1121 = vmax.f32 %v1089, 0.0
    %v1122 = vmax.f32 %v1090, 0.0
    %v1123 = vmax.f32 %v1091, 0.0
    %v1124 = vmax.f32 %v1092, 0.0
    %v1125 = vmax.f32 %v1093, 0.0
    %v1126 = vmax.f32 %v1094, 0.0
    %v1127 = vmax.f32 %v1095, 0.0
    %v1128 = vmax.f32 %v1096, 0.0
    %v1129 = vpack.c.bf16 %v1098, %v1097
    %v1130 = vpack.c.bf16 %v1100, %v1099
    %v1131 = vpack.c.bf16 %v1102, %v1101
    %v1132 = vpack.c.bf16 %v1104, %v1103
    %v1133 = vpack.c.bf16 %v1106, %v1105
    %v1134 = vpack.c.bf16 %v1108, %v1107
    %v1135 = vpack.c.bf16 %v1110, %v1109
    %v1136 = vpack.c.bf16 %v1112, %v1111
    %v1137 = vpack.c.bf16 %v1114, %v1113
    %v1138 = vpack.c.bf16 %v1116, %v1115
    %v1139 = vpack.c.bf16 %v1118, %v1117
    %v1140 = vpack.c.bf16 %v1120, %v1119
    %v1141 = vpack.c.bf16 %v1122, %v1121
    %v1142 = vpack.c.bf16 %v1124, %v1123
    %v1143 = vpack.c.bf16 %v1126, %v1125
    %v1144 = vpack.c.bf16 %v1128, %v1127
    %v1145 = vld [vmem:[%s3] sm:$0xf]
    %v1146 = vld [vmem:[%s3 + $0x4] sm:$0xf]
    %v1147 = vld [vmem:[%s3 + $0x8] sm:$0xf]
    %v1148 = vld [vmem:[%s3 + $0xc] sm:$0xf]
    %v1149 = vld [vmem:[%s3 + $0x10] sm:$0xf]
    %v1150 = vld [vmem:[%s3 + $0x14] sm:$0xf]
    %v1151 = vld [vmem:[%s3 + $0x18] sm:$0xf]
    %v1152 = vld [vmem:[%s3 + $0x1c] sm:$0xf]
    %v1153 = vld [vmem:[%s3 + $0x20] sm:$0xf]
    %v1154 = vld [vmem:[%s3 + $0x24] sm:$0xf]
    %v1155 = vld [vmem:[%s3 + $0x28] sm:$0xf]
    %v1156 = vld [vmem:[%s3 + $0x2c] sm:$0xf]
    %v1157 = vld [vmem:[%s3 + $0x30] sm:$0xf]
    %v1158 = vld [vmem:[%s3 + $0x34] sm:$0xf]
    %v1159 = vld [vmem:[%s3 + $0x38] sm:$0xf]
    %v1160 = vld [vmem:[%s3 + $0x3c] sm:$0xf]
    %v1161 = vld [vmem:[%s8] sm:$0x1]
    %v1163 = vlaneseq
    %v1164 = vshrl.u32 %v1163, 7
    %v1165 = vsub.s32 0, %v1164
    %v1166 = vrot.slane %v1161, %v1165
    %v1184 = vunpack.c.l.b16 %v1145
    %v1185 = vunpack.c.l.b16 %v1146
    %v1186 = vunpack.c.l.b16 %v1147
    %v1187 = vunpack.c.l.b16 %v1148
    %v1188 = vunpack.c.l.b16 %v1149
    %v1189 = vunpack.c.l.b16 %v1150
    %v1190 = vunpack.c.l.b16 %v1151
    %v1191 = vunpack.c.l.b16 %v1152
    %v1192 = vunpack.c.l.b16 %v1153
    %v1193 = vunpack.c.l.b16 %v1154
    %v1194 = vunpack.c.l.b16 %v1155
    %v1195 = vunpack.c.l.b16 %v1156
    %v1196 = vunpack.c.l.b16 %v1157
    %v1197 = vunpack.c.l.b16 %v1158
    %v1198 = vunpack.c.l.b16 %v1159
    %v1199 = vunpack.c.l.b16 %v1160
    %v1200 = vpack.c.b16 %v1185, %v1184
    %v1201 = vpack.c.b16 %v1187, %v1186
    %v1202 = vpack.c.b16 %v1189, %v1188
    %v1203 = vpack.c.b16 %v1191, %v1190
    %v1204 = vpack.c.b16 %v1193, %v1192
    %v1205 = vpack.c.b16 %v1195, %v1194
    %v1206 = vpack.c.b16 %v1197, %v1196
    %v1207 = vpack.c.b16 %v1199, %v1198
    %1216 = vmatprep.subr.bf16.mxu0 0
    %1217 = vmatpush1.bf16.msra.mxu0 %v1200
    %1218 = vmatprep.subr.bf16.mxu0 0
    %1219 = vmatpush1.bf16.msra.mxu0 %v1201
    %1220 = vmatprep.subr.bf16.mxu0 0
    %1221 = vmatpush1.bf16.msra.mxu0 %v1202
    %1222 = vmatprep.subr.bf16.mxu0 0
    %1223 = vmatpush1.bf16.msra.mxu0 %v1203
    %1224 = vmatprep.subr.bf16.mxu0 0
    %1225 = vmatpush1.bf16.msra.mxu0 %v1204
    %1226 = vmatprep.subr.bf16.mxu0 0
    %1227 = vmatpush1.bf16.msra.mxu0 %v1205
    %1228 = vmatprep.subr.bf16.mxu0 0
    %1229 = vmatpush1.bf16.msra.mxu0 %v1206
    %1230 = vmatprep.subr.bf16.mxu0 0
    %1231 = vmatpush1.bf16.msra.mxu0 %v1207
    %1232 = vmatprep.subr.bf16.mxu0 0
    %1233 = vmatpush1.bf16.msra.mxu0 0
    %1234 = vmatprep.subr.bf16.mxu0 0
    %1235 = vmatpush1.bf16.msra.mxu0 0
    %1236 = vmatprep.subr.bf16.mxu0 0
    %1237 = vmatpush1.bf16.msra.mxu0 0
    %1238 = vmatprep.subr.bf16.mxu0 0
    %1239 = vmatpush1.bf16.msra.mxu0 0
    %1240 = vmatprep.subr.bf16.mxu0 0
    %1241 = vmatpush1.bf16.msra.mxu0 0
    %1242 = vmatprep.subr.bf16.mxu0 0
    %1243 = vmatpush1.bf16.msra.mxu0 0
    %1244 = vmatprep.subr.bf16.mxu0 0
    %1245 = vmatpush1.bf16.msra.mxu0 0
    %1246 = vmatprep.subr.bf16.mxu0 0
    %1247 = vmatpush1.bf16.msra.mxu0 0
    %1248 = vmatprep.mubr.bf16.mxu0 0
    %1249 = vmatmul.mubr.bf16.gmra.mrb[0].mxu0 %v1129
    %v1250 = vpop.f32.mrb[0].mxu0
    %v1251 = vadd.f32 %v1166, %v1250
    %v1252 = vpop.f32.mrb[0].mxu0
    %v1253 = vpop.f32.mrb[0].mxu0
    %v1254 = vadd.f32 %v1166, %v1253
    %v1255 = vpop.f32.mrb[0].mxu0
    %1256 = vmatprep.mubr.bf16.mxu0 0
    %1257 = vmatmul.mubr.bf16.gmra.mrb[0].mxu0 %v1130
    %v1258 = vpop.f32.mrb[0].mxu0
    %v1259 = vadd.f32 %v1166, %v1258
    %v1260 = vpop.f32.mrb[0].mxu0
    %v1261 = vpop.f32.mrb[0].mxu0
    %v1262 = vadd.f32 %v1166, %v1261
    %v1263 = vpop.f32.mrb[0].mxu0
    %1264 = vmatprep.mubr.bf16.mxu0 0
    %1265 = vmatmul.mubr.bf16.gmra.mrb[0].mxu0 %v1131
    %v1266 = vpop.f32.mrb[0].mxu0
    %v1267 = vadd.f32 %v1166, %v1266
    %v1268 = vpop.f32.mrb[0].mxu0
    %v1269 = vpop.f32.mrb[0].mxu0
    %v1270 = vadd.f32 %v1166, %v1269
    %v1271 = vpop.f32.mrb[0].mxu0
    %1272 = vmatprep.mubr.bf16.mxu0 0
    %1273 = vmatmul.mubr.bf16.gmra.mrb[0].mxu0 %v1132
    %v1274 = vpop.f32.mrb[0].mxu0
    %v1275 = vadd.f32 %v1166, %v1274
    %v1276 = vpop.f32.mrb[0].mxu0
    %v1277 = vpop.f32.mrb[0].mxu0
    %v1278 = vadd.f32 %v1166, %v1277
    %v1279 = vpop.f32.mrb[0].mxu0
    %1280 = vmatprep.mubr.bf16.mxu0 0
    %1281 = vmatmul.mubr.bf16.gmra.mrb[0].mxu0 %v1133
    %v1282 = vpop.f32.mrb[0].mxu0
    %v1283 = vadd.f32 %v1166, %v1282
    %v1284 = vpop.f32.mrb[0].mxu0
    %v1285 = vpop.f32.mrb[0].mxu0
    %v1286 = vadd.f32 %v1166, %v1285
    %v1287 = vpop.f32.mrb[0].mxu0
    %1288 = vmatprep.mubr.bf16.mxu0 0
    %1289 = vmatmul.mubr.bf16.gmra.mrb[0].mxu0 %v1134
    %v1290 = vpop.f32.mrb[0].mxu0
    %v1291 = vadd.f32 %v1166, %v1290
    %v1292 = vpop.f32.mrb[0].mxu0
    %v1293 = vpop.f32.mrb[0].mxu0
    %v1294 = vadd.f32 %v1166, %v1293
    %v1295 = vpop.f32.mrb[0].mxu0
    %1296 = vmatprep.mubr.bf16.mxu0 0
    %1297 = vmatmul.mubr.bf16.gmra.mrb[0].mxu0 %v1135
    %v1298 = vpop.f32.mrb[0].mxu0
    %v1299 = vadd.f32 %v1166, %v1298
    %v1300 = vpop.f32.mrb[0].mxu0
    %v1301 = vpop.f32.mrb[0].mxu0
    %v1302 = vadd.f32 %v1166, %v1301
    %v1303 = vpop.f32.mrb[0].mxu0
    %1304 = vmatprep.mubr.bf16.mxu0 0
    %1305 = vmatmul.mubr.bf16.gmra.mrb[0].mxu0 %v1136
    %v1306 = vpop.f32.mrb[0].mxu0
    %v1307 = vadd.f32 %v1166, %v1306
    %v1308 = vpop.f32.mrb[0].mxu0
    %v1309 = vpop.f32.mrb[0].mxu0
    %v1310 = vadd.f32 %v1166, %v1309
    %v1311 = vpop.f32.mrb[0].mxu0
    %1312 = vmatprep.mubr.bf16.mxu0 0
    %1313 = vmatmul.mubr.bf16.gmra.mrb[0].mxu0 %v1137
    %v1314 = vpop.f32.mrb[0].mxu0
    %v1315 = vadd.f32 %v1166, %v1314
    %v1316 = vpop.f32.mrb[0].mxu0
    %v1317 = vpop.f32.mrb[0].mxu0
    %v1318 = vadd.f32 %v1166, %v1317
    %v1319 = vpop.f32.mrb[0].mxu0
    %1320 = vmatprep.mubr.bf16.mxu0 0
    %1321 = vmatmul.mubr.bf16.gmra.mrb[0].mxu0 %v1138
    %v1322 = vpop.f32.mrb[0].mxu0
    %v1323 = vadd.f32 %v1166, %v1322
    %v1324 = vpop.f32.mrb[0].mxu0
    %v1325 = vpop.f32.mrb[0].mxu0
    %v1326 = vadd.f32 %v1166, %v1325
    %v1327 = vpop.f32.mrb[0].mxu0
    %1328 = vmatprep.mubr.bf16.mxu0 0
    %1329 = vmatmul.mubr.bf16.gmra.mrb[0].mxu0 %v1139
    %v1330 = vpop.f32.mrb[0].mxu0
    %v1331 = vadd.f32 %v1166, %v1330
    %v1332 = vpop.f32.mrb[0].mxu0
    %v1333 = vpop.f32.mrb[0].mxu0
    %v1334 = vadd.f32 %v1166, %v1333
    %v1335 = vpop.f32.mrb[0].mxu0
    %1336 = vmatprep.mubr.bf16.mxu0 0
    %1337 = vmatmul.mubr.bf16.gmra.mrb[0].mxu0 %v1140
    %v1338 = vpop.f32.mrb[0].mxu0
    %v1339 = vadd.f32 %v1166, %v1338
    %v1340 = vpop.f32.mrb[0].mxu0
    %v1341 = vpop.f32.mrb[0].mxu0
    %v1342 = vadd.f32 %v1166, %v1341
    %v1343 = vpop.f32.mrb[0].mxu0
    %1344 = vmatprep.mubr.bf16.mxu0 0
    %1345 = vmatmul.mubr.bf16.gmra.mrb[0].mxu0 %v1141
    %v1346 = vpop.f32.mrb[0].mxu0
    %v1347 = vadd.f32 %v1166, %v1346
    %v1348 = vpop.f32.mrb[0].mxu0
    %v1349 = vpop.f32.mrb[0].mxu0
    %v1350 = vadd.f32 %v1166, %v1349
    %v1351 = vpop.f32.mrb[0].mxu0
    %1352 = vmatprep.mubr.bf16.mxu0 0
    %1353 = vmatmul.mubr.bf16.gmra.mrb[0].mxu0 %v1142
    %v1354 = vpop.f32.mrb[0].mxu0
    %v1355 = vadd.f32 %v1166, %v1354
    %v1356 = vpop.f32.mrb[0].mxu0
    %v1357 = vpop.f32.mrb[0].mxu0
    %v1358 = vadd.f32 %v1166, %v1357
    %v1359 = vpop.f32.mrb[0].mxu0
    %1360 = vmatprep.mubr.bf16.mxu0 0
    %1361 = vmatmul.mubr.bf16.gmra.mrb[0].mxu0 %v1143
    %v1362 = vpop.f32.mrb[0].mxu0
    %v1363 = vadd.f32 %v1166, %v1362
    %v1364 = vpop.f32.mrb[0].mxu0
    %v1365 = vpop.f32.mrb[0].mxu0
    %v1366 = vadd.f32 %v1166, %v1365
    %v1367 = vpop.f32.mrb[0].mxu0
    %1368 = vmatprep.mubr.bf16.mxu0 0
    %1369 = vmatmul.mubr.bf16.gmra.mrb[0].mxu0 %v1144
    %v1370 = vpop.f32.mrb[0].mxu0
    %v1371 = vadd.f32 %v1166, %v1370
    %v1372 = vpop.f32.mrb[0].mxu0
    %v1373 = vpop.f32.mrb[0].mxu0
    %v1374 = vadd.f32 %v1166, %v1373
    %v1375 = vpop.f32.mrb[0].mxu0
    %1376 = vdwg.mxu0
    %v1377 = vmax.f32 %v1251, 0.0
    %v1378 = vmax.f32 %v1254, 0.0
    %v1379 = vmax.f32 %v1259, 0.0
    %v1380 = vmax.f32 %v1262, 0.0
    %v1381 = vmax.f32 %v1267, 0.0
    %v1382 = vmax.f32 %v1270, 0.0
    %v1383 = vmax.f32 %v1275, 0.0
    %v1384 = vmax.f32 %v1278, 0.0
    %v1385 = vmax.f32 %v1283, 0.0
    %v1386 = vmax.f32 %v1286, 0.0
    %v1387 = vmax.f32 %v1291, 0.0
    %v1388 = vmax.f32 %v1294, 0.0
    %v1389 = vmax.f32 %v1299, 0.0
    %v1390 = vmax.f32 %v1302, 0.0
    %v1391 = vmax.f32 %v1307, 0.0
    %v1392 = vmax.f32 %v1310, 0.0
    %v1393 = vmax.f32 %v1315, 0.0
    %v1394 = vmax.f32 %v1318, 0.0
    %v1395 = vmax.f32 %v1323, 0.0
    %v1396 = vmax.f32 %v1326, 0.0
    %v1397 = vmax.f32 %v1331, 0.0
    %v1398 = vmax.f32 %v1334, 0.0
    %v1399 = vmax.f32 %v1339, 0.0
    %v1400 = vmax.f32 %v1342, 0.0
    %v1401 = vmax.f32 %v1347, 0.0
    %v1402 = vmax.f32 %v1350, 0.0
    %v1403 = vmax.f32 %v1355, 0.0
    %v1404 = vmax.f32 %v1358, 0.0
    %v1405 = vmax.f32 %v1363, 0.0
    %v1406 = vmax.f32 %v1366, 0.0
    %v1407 = vmax.f32 %v1371, 0.0
    %v1408 = vmax.f32 %v1374, 0.0
    %1409 = vst [vmem:[#allocation4] sm:$0xff] %v1377
    %1410 = vst [vmem:[#allocation4 + $0x8] sm:$0xff] %v1378
    %1411 = vst [vmem:[#allocation4 + $0x10] sm:$0xff] %v1379
    %1412 = vst [vmem:[#allocation4 + $0x18] sm:$0xff] %v1380
    %1413 = vst [vmem:[#allocation4 + $0x20] sm:$0xff] %v1381
    %1414 = vst [vmem:[#allocation4 + $0x28] sm:$0xff] %v1382
    %1415 = vst [vmem:[#allocation4 + $0x30] sm:$0xff] %v1383
    %1416 = vst [vmem:[#allocation4 + $0x38] sm:$0xff] %v1384
    %1417 = vst [vmem:[#allocation4 + $0x40] sm:$0xff] %v1385
    %1418 = vst [vmem:[#allocation4 + $0x48] sm:$0xff] %v1386
    %1419 = vst [vmem:[#allocation4 + $0x50] sm:$0xff] %v1387
    %1420 = vst [vmem:[#allocation4 + $0x58] sm:$0xff] %v1388
    %1421 = vst [vmem:[#allocation4 + $0x60] sm:$0xff] %v1389
    %1422 = vst [vmem:[#allocation4 + $0x68] sm:$0xff] %v1390
    %1423 = vst [vmem:[#allocation4 + $0x70] sm:$0xff] %v1391
    %1424 = vst [vmem:[#allocation4 + $0x78] sm:$0xff] %v1392
    %1425 = vst [vmem:[#allocation4 + $0x80] sm:$0xff] %v1393
    %1426 = vst [vmem:[#allocation4 + $0x88] sm:$0xff] %v1394
    %1427 = vst [vmem:[#allocation4 + $0x90] sm:$0xff] %v1395
    %1428 = vst [vmem:[#allocation4 + $0x98] sm:$0xff] %v1396
    %1429 = vst [vmem:[#allocation4 + $0xa0] sm:$0xff] %v1397
    %1430 = vst [vmem:[#allocation4 + $0xa8] sm:$0xff] %v1398
    %1431 = vst [vmem:[#allocation4 + $0xb0] sm:$0xff] %v1399
    %1432 = vst [vmem:[#allocation4 + $0xb8] sm:$0xff] %v1400
    %1433 = vst [vmem:[#allocation4 + $0xc0] sm:$0xff] %v1401
    %1434 = vst [vmem:[#allocation4 + $0xc8] sm:$0xff] %v1402
    %1435 = vst [vmem:[#allocation4 + $0xd0] sm:$0xff] %v1403
    %1436 = vst [vmem:[#allocation4 + $0xd8] sm:$0xff] %v1404
    %1437 = vst [vmem:[#allocation4 + $0xe0] sm:$0xff] %v1405
    %1438 = vst [vmem:[#allocation4 + $0xe8] sm:$0xff] %v1406
    %1439 = vst [vmem:[#allocation4 + $0xf0] sm:$0xff] %v1407
    %1440 = vst [vmem:[#allocation4 + $0xf8] sm:$0xff] %v1408
    // Predicated region
    $region38: #{tpu_custom_call.1} parent=1 // pred_check
      _
    $region39: #{tpu_custom_call.1} parent=1 // pred_check_branch
      %1442 = sbr.rel (0) target = $region41
    $region40: #{tpu_custom_call.1} parent=1 // pred_region
      %s1444 = ssub.s32 4096, 4096
      %1445 = vsyncadd [#allocation5], %s1444
      %s1446 = sshll.u32 [#allocation4], 4
      %s1447 = int_to_ptr.vmem [resolvable:$true] %s1446
      %1452 = dma.vmem_to_hbm [thread:$0]  %s1447, 4096, %s9, [#allocation5], 128, 128, 8
    $region41: #{tpu_custom_call.1} parent=1 // pred_fallthru
      _
    // Predicated region
    $region42: #{tpu_custom_call.1} parent=1 // pred_check
      _
    $region43: #{tpu_custom_call.1} parent=1 // pred_check_branch
      %1454 = sbr.rel (0) target = $region45
    $region44: #{tpu_custom_call.1} parent=1 // pred_region
      %1455 = dma.done [#allocation5], 4096
    $region45: #{tpu_custom_call.1} parent=1 // pred_fallthru
      _
    %1456 = vsyncpa [#allocation5], 1

</llo_original>
